<compile_context>
chip_gen: v7x
topology: tpu7x:2x2x1
jax: 0.10.0
libtpu: 0.0.40
codegen_flags: <defaults>
</compile_context>

<pallas_src>
import functools

import jax
import jax.numpy as jnp
from jax import lax
from jax.experimental import pallas as pl
from jax.experimental.pallas import tpu as pltpu


# ----------------------------------------------------------------------------
# Fused Pallas kernel: l2norm + all layers + all heads + head-mean + ELU.
# ----------------------------------------------------------------------------
def _make_fused_kernel(num_layer, nh_list, l2norm, n_nodes, f_dim):
    def kernel(*refs):
        x_ref, adj_ref, rc_ref = refs[0], refs[1], refs[2]
        param_refs = refs[3:3 + 3 * num_layer]
        out_ref = refs[-1]

        x = x_ref[...].astype(jnp.float32)               # (N, F)
        adj = adj_ref[...]                                # (N, N)
        rc = rc_ref[...].astype(jnp.float32)              # (N, N)

        # Relation weighting + adjacency mask folded into ONE additive bias,
        # computed a single time for the whole stack.  Masked entries get a
        # large negative so exp underflows to exactly 0 — no per-head rc
        # multiply and no post-exp mask select are needed anymore.
        neg = jnp.float32(-1e30)
        e_base = jnp.where(adj > 0, jnp.log(rc), neg)     # (N, N) f32

        if l2norm:
            # F.normalize(x): l2 norm over features, eps=1e-12
            norm = jnp.sqrt(jnp.sum(x * x, axis=-1, keepdims=True))
            x = x / jnp.maximum(norm, jnp.float32(1e-12))

        ones_col = jnp.ones((n_nodes, 1), jnp.float32)    # hoisted out of loops

        for li in range(num_layer):
            att_src = param_refs[3 * li][...]             # (nh, F) bf16, w folded
            att_dst = param_refs[3 * li + 1][...]         # (nh, F) bf16, w folded
            w_mean = param_refs[3 * li + 2][...]          # (nh, F) f32, w / nh
            nh = nh_list[li]

            # Cast the layer input to bf16 ONCE; the diagonal w never
            # materializes as hw = x * w[h].
            x_bf = x.astype(jnp.bfloat16)                                 # (N, F)
            # Ones column folds the softmax denominator into the MXU matmul.
            x_aug = jnp.concatenate([x, ones_col], axis=-1)               # (N, F+1)
            x_aug = x_aug.astype(jnp.bfloat16)

            # All-head scores in two bf16 matmuls; dst scores are produced
            # directly in row layout so no per-head transpose is required.
            s_src = lax.dot_general(x_bf, att_src, (((1,), (1,)), ((), ())),
                                    preferred_element_type=jnp.float32)   # (N, nh)
            s_dst = lax.dot_general(att_dst, x_bf, (((1,), (1,)), ((), ())),
                                    preferred_element_type=jnp.float32)   # (nh, N)

            # Per-head (N, N) softmax numerators (f32 elementwise pipeline).
            alphas = []
            for h in range(nh):                           # heads unrolled in-body
                e = s_src[:, h:h + 1] + s_dst[h:h + 1, :]                 # (N, N)
                e = jnp.maximum(e, 0.2 * e)               # LeakyReLU(0.2)
                e = e + e_base                            # + log(rc) / mask
                e_max = jnp.max(e, axis=-1, keepdims=True)
                # Guard fully-masked rows (no self-loop): the clamp makes the
                # exponent ~-1e30 everywhere so exp underflows to 0 and the
                # row aggregates to 0, matching the reference semantics.
                e_max = jnp.maximum(e_max, jnp.float32(-1e20))
                alphas.append(jnp.exp(e - e_max).astype(jnp.bfloat16))

            # ONE aggregation matmul per layer: stack heads along rows to fill
            # the MXU; the last output column is the per-row softmax denom.
            alpha_all = jnp.concatenate(alphas, axis=0)                   # (nh*N, N)
            agg = lax.dot_general(alpha_all, x_aug, (((1,), (0,)), ((), ())),
                                  preferred_element_type=jnp.float32)     # (nh*N, F+1)

            acc = jnp.zeros((n_nodes, f_dim), jnp.float32)
            for h in range(nh):
                blk = agg[h * n_nodes:(h + 1) * n_nodes, :]
                num = blk[:, :f_dim]                      # alpha_h @ x   (N, F)
                den = blk[:, f_dim:f_dim + 1]             # row sums      (N, 1)
                inv = pl.reciprocal(den + jnp.float32(1e-12), approx=True)
                # per-head normalization; diagonal w and 1/nh head-mean are
                # both folded into w_mean.
                acc = acc + (num * inv) * w_mean[h:h + 1, :]

            x = acc                                       # mean over heads (diag)
            if li + 1 < num_layer:
                x = jnp.where(x > 0, x, jnp.exp(x) - 1.0)  # ELU between layers

        out_ref[...] = x.astype(out_ref.dtype)

    return kernel


def rgat3_forward(x, adj, r_count, params, *, l2norm=True, diag=True):
    """RGAT3 forward (eval mode: dropout is identity; instance_norm=False)."""
    assert diag, "only the diag=True path is implemented"
    n_nodes, f_dim = x.shape
    num_layer = len(params)

    # Fold the diagonal weight w into the score vectors and the head-mean into
    # the output scale — pure parameter plumbing outside the kernel.
    nh_list = []
    flat_params = []
    for p in params:
        w, a_src, a_dst = p["w"], p["a_src"], p["a_dst"]
        nh, f_out = w.shape
        assert f_out == f_dim, "diag layer requires f_in == f_out"
        nh_list.append(nh)
        flat_params += [
            (a_src * w).astype(jnp.bfloat16),   # att_src with w folded in
            (a_dst * w).astype(jnp.bfloat16),   # att_dst with w folded in
            (w / nh).astype(jnp.float32),       # w with head-mean folded in
        ]

    def full_spec(shape):
        nd = len(shape)
        return pl.BlockSpec(shape, lambda *_: (0,) * nd)

    in_specs = [full_spec(x.shape), full_spec(adj.shape), full_spec(r_count.shape)]
    in_specs += [full_spec(a.shape) for a in flat_params]

    return pl.pallas_call(
        _make_fused_kernel(num_layer, tuple(nh_list), l2norm, n_nodes, f_dim),
        out_shape=jax.ShapeDtypeStruct((n_nodes, f_dim), jnp.float32),
        grid=(1,),
        in_specs=in_specs,
        out_specs=full_spec((n_nodes, f_dim)),
        compiler_params=pltpu.CompilerParams(
            dimension_semantics=("arbitrary",)),
    )(x, adj, r_count, *flat_params)


# ----------------------------------------------------------------------------
# Pure-JAX reference (same math, f32 throughout) for a correctness check.
# ----------------------------------------------------------------------------
def rgat3_reference(x, adj, r_count, params, *, l2norm=True):
    if l2norm:
        norm = jnp.sqrt(jnp.sum(x * x, axis=-1, keepdims=True))
        x = x / jnp.maximum(norm, 1e-12)
    mask = adj > 0
    num_layer = len(params)
    for li, p in enumerate(params):
        w, a_src, a_dst = p["w"], p["a_src"], p["a_dst"]
        nh = w.shape[0]
        heads = []
        for h in range(nh):
            hw = x * w[h][None, :]
            src = hw @ a_src[h]
            dst = hw @ a_dst[h]
            e = src[:, None] + dst[None, :]
            e = jnp.where(e > 0, e, 0.2 * e)
            e = jnp.where(mask, e, -1e30)
            e = e - jnp.max(e, axis=-1, keepdims=True)
            alpha = jnp.exp(e) * r_count
            alpha = jnp.where(mask, alpha, 0.0)
            alpha = alpha / (jnp.sum(alpha, axis=-1, keepdims=True) + 1e-12)
            heads.append(alpha @ hw)
        x = jnp.mean(jnp.stack(heads), axis=0)
        if li + 1 < num_layer:
            x = jax.nn.elu(x)
    return x


# ----------------------------------------------------------------------------
# Deterministic parameter init (shapes implied by __init__ with diag=True).
# ----------------------------------------------------------------------------
def init_params(key, n_units, n_heads):
    num_layer = len(n_units) - 1
    params = []
    for i in range(num_layer):
        f_out = n_units[i + 1]
        nh = n_heads[i]
        key, k1, k2 = jax.random.split(key, 3)
        params.append({
            # init=nn.init.ones_ → diag weights are ones
            "w": jnp.ones((nh, f_out), jnp.float32),
            "a_src": 0.1 * jax.random.normal(k1, (nh, f_out), jnp.float32),
            "a_dst": 0.1 * jax.random.normal(k2, (nh, f_out), jnp.float32),
        })
    return params


if __name__ == "__main__":
    key = jax.random.PRNGKey(0)

    N = 64           # number of graph nodes
    F = 32           # feature dim (n_units = [32, 32, 32], diag ⇒ constant)
    n_units = [F, F, F]
    n_heads = [2, 2]

    key, kx, ka, kr, kp = jax.random.split(key, 5)
    x = jax.random.normal(kx, (N, F), jnp.float32)

    # dense adjacency with self-loops
    rand_adj = (jax.random.uniform(ka, (N, N)) < 0.15).astype(jnp.float32)
    adj = jnp.maximum(rand_adj, jnp.eye(N, dtype=jnp.float32))

    # relation counts: positive where an edge exists, 0 otherwise
    r_count = jnp.where(
        adj > 0,
        1.0 + jnp.floor(3.0 * jax.random.uniform(kr, (N, N))),
        0.0,
    ).astype(jnp.float32)

    params = init_params(kp, n_units, n_heads)

    fwd = jax.jit(functools.partial(rgat3_forward, l2norm=True, diag=True))
    out = fwd(x, adj, r_count, params)
    jax.block_until_ready(out)

    assert out.shape == (N, F), out.shape
    assert jnp.all(jnp.isfinite(out))

    # correctness check vs pure-JAX reference (generous tol: bf16 MXU operands
    # + approximate reciprocal in the kernel)
    ref = rgat3_reference(x, adj, r_count, params, l2norm=True)
    max_err = float(jnp.max(jnp.abs(out - ref)))
    assert max_err < 5e-2, f"max abs err vs reference: {max_err}"

    print("KERNEL_OK")
</pallas_src>

<mosaic_0001>
module attributes {stable_mosaic.version = 11 : i64} {
  func.func @kernel(%arg0: i32, %arg1: memref<64x32xf32, #tpu.memory_space<vmem>>, %arg2: memref<64x64xf32, #tpu.memory_space<vmem>>, %arg3: memref<64x64xf32, #tpu.memory_space<vmem>>, %arg4: memref<2x32xbf16, #tpu.memory_space<vmem>>, %arg5: memref<2x32xbf16, #tpu.memory_space<vmem>>, %arg6: memref<2x32xf32, #tpu.memory_space<vmem>>, %arg7: memref<2x32xbf16, #tpu.memory_space<vmem>>, %arg8: memref<2x32xbf16, #tpu.memory_space<vmem>>, %arg9: memref<2x32xf32, #tpu.memory_space<vmem>>, %arg10: memref<64x32xf32, #tpu.memory_space<vmem>>) attributes {dimension_semantics = [#tpu.dimension_semantics<arbitrary>], iteration_bounds = array<i64: 1>, scalar_prefetch = 0 : i64, scratch_operands = 0 : i64, tpu.core_type = #tpu.core_type<tc>, window_params = [{pipeline_mode = #tpu.pipeline_mode<synchronous>, transform_indices = @transform_0, window_bounds = array<i64: 64, 32>}, {pipeline_mode = #tpu.pipeline_mode<synchronous>, transform_indices = @transform_1, window_bounds = array<i64: 64, 64>}, {pipeline_mode = #tpu.pipeline_mode<synchronous>, transform_indices = @transform_2, window_bounds = array<i64: 64, 64>}, {pipeline_mode = #tpu.pipeline_mode<synchronous>, transform_indices = @transform_3, window_bounds = array<i64: 2, 32>}, {pipeline_mode = #tpu.pipeline_mode<synchronous>, transform_indices = @transform_4, window_bounds = array<i64: 2, 32>}, {pipeline_mode = #tpu.pipeline_mode<synchronous>, transform_indices = @transform_5, window_bounds = array<i64: 2, 32>}, {pipeline_mode = #tpu.pipeline_mode<synchronous>, transform_indices = @transform_6, window_bounds = array<i64: 2, 32>}, {pipeline_mode = #tpu.pipeline_mode<synchronous>, transform_indices = @transform_7, window_bounds = array<i64: 2, 32>}, {pipeline_mode = #tpu.pipeline_mode<synchronous>, transform_indices = @transform_8, window_bounds = array<i64: 2, 32>}, {pipeline_mode = #tpu.pipeline_mode<synchronous>, transform_indices = @transform_9, window_bounds = array<i64: 64, 32>}]} {
    %c0 = arith.constant 0 : index
    %c0_0 = arith.constant 0 : index
    %0 = vector.load %arg1[%c0, %c0_0] : memref<64x32xf32, #tpu.memory_space<vmem>>, vector<64x32xf32>
    %c0_1 = arith.constant 0 : index
    %c0_2 = arith.constant 0 : index
    %1 = vector.load %arg2[%c0_1, %c0_2] : memref<64x64xf32, #tpu.memory_space<vmem>>, vector<64x64xf32>
    %c0_3 = arith.constant 0 : index
    %c0_4 = arith.constant 0 : index
    %2 = vector.load %arg3[%c0_3, %c0_4] : memref<64x64xf32, #tpu.memory_space<vmem>>, vector<64x64xf32>
    %cst = arith.constant 0.000000e+00 : f32
    %3 = vector.broadcast %cst : f32 to vector<64x64xf32>
    %4 = arith.cmpf ogt, %1, %3 : vector<64x64xf32>
    %5 = math.log %2 : vector<64x64xf32>
    %cst_5 = arith.constant -1.000000e+30 : f32
    %6 = vector.broadcast %cst_5 : f32 to vector<64x64xf32>
    %7 = arith.select %4, %5, %6 : vector<64x64xi1>, vector<64x64xf32>
    %8 = arith.mulf %0, %0 : vector<64x32xf32>
    %cst_6 = arith.constant dense<0.000000e+00> : vector<64xf32>
    %9 = vector.multi_reduction <add>, %8, %cst_6 [1] : vector<64x32xf32> to vector<64xf32>
    %10 = vector.shape_cast %9 : vector<64xf32> to vector<64x1xf32>
    %11 = math.sqrt %10 : vector<64x1xf32>
    %cst_7 = arith.constant 9.99999996E-13 : f32
    %12 = vector.broadcast %cst_7 : f32 to vector<64x1xf32>
    %13 = arith.maximumf %11, %12 : vector<64x1xf32>
    %14 = vector.broadcast %13 : vector<64x1xf32> to vector<64x32xf32>
    %15 = arith.divf %0, %14 : vector<64x32xf32>
    %cst_8 = arith.constant 1.000000e+00 : f32
    %16 = vector.broadcast %cst_8 : f32 to vector<64x1xf32>
    %c0_9 = arith.constant 0 : index
    %c0_10 = arith.constant 0 : index
    %17 = vector.load %arg4[%c0_9, %c0_10] : memref<2x32xbf16, #tpu.memory_space<vmem>>, vector<2x32xbf16>
    %c0_11 = arith.constant 0 : index
    %c0_12 = arith.constant 0 : index
    %18 = vector.load %arg5[%c0_11, %c0_12] : memref<2x32xbf16, #tpu.memory_space<vmem>>, vector<2x32xbf16>
    %c0_13 = arith.constant 0 : index
    %c0_14 = arith.constant 0 : index
    %19 = vector.load %arg6[%c0_13, %c0_14] : memref<2x32xf32, #tpu.memory_space<vmem>>, vector<2x32xf32>
    %20 = arith.truncf %15 : vector<64x32xf32> to vector<64x32xbf16>
    %21 = tpu.concatenate %15, %16 in 1 : vector<64x32xf32>, vector<64x1xf32> -> vector<64x33xf32>
    %22 = arith.truncf %21 : vector<64x33xf32> to vector<64x33xbf16>
    %cst_15 = arith.constant dense<0.000000e+00> : vector<64x2xf32>
    %23 = tpu.matmul %20, %17, %cst_15 {dimension_numbers = #tpu.dot_dimension_numbers<[1], [1], [0], [0], [0, 0, 1, 0], [], []>} : vector<64x32xbf16>, vector<2x32xbf16>, vector<64x2xf32> -> vector<64x2xf32>
    %cst_16 = arith.constant dense<0.000000e+00> : vector<2x64xf32>
    %24 = tpu.matmul %18, %20, %cst_16 {dimension_numbers = #tpu.dot_dimension_numbers<[1], [1], [0], [0], [0, 0, 1, 0], [], []>} : vector<2x32xbf16>, vector<64x32xbf16>, vector<2x64xf32> -> vector<2x64xf32>
    %25 = vector.extract_strided_slice %23 {offsets = [0, 0], sizes = [64, 1], strides = [1, 1]} : vector<64x2xf32> to vector<64x1xf32>
    %26 = vector.extract_strided_slice %24 {offsets = [0, 0], sizes = [1, 64], strides = [1, 1]} : vector<2x64xf32> to vector<1x64xf32>
    %27 = vector.broadcast %25 : vector<64x1xf32> to vector<64x64xf32>
    %28 = vector.broadcast %26 : vector<1x64xf32> to vector<64x64xf32>
    %29 = arith.addf %27, %28 : vector<64x64xf32>
    %cst_17 = arith.constant 2.000000e-01 : f32
    %30 = vector.broadcast %cst_17 : f32 to vector<64x64xf32>
    %31 = arith.mulf %30, %29 : vector<64x64xf32>
    %32 = arith.maximumf %29, %31 : vector<64x64xf32>
    %33 = arith.addf %32, %7 : vector<64x64xf32>
    %cst_18 = arith.constant dense<0xFF800000> : vector<64xf32>
    %34 = vector.multi_reduction <maximumf>, %33, %cst_18 [1] : vector<64x64xf32> to vector<64xf32>
    %35 = vector.shape_cast %34 : vector<64xf32> to vector<64x1xf32>
    %cst_19 = arith.constant -1.000000e+20 : f32
    %36 = vector.broadcast %cst_19 : f32 to vector<64x1xf32>
    %37 = arith.maximumf %35, %36 : vector<64x1xf32>
    %38 = vector.broadcast %37 : vector<64x1xf32> to vector<64x64xf32>
    %39 = arith.subf %33, %38 : vector<64x64xf32>
    %40 = math.exp %39 : vector<64x64xf32>
    %41 = arith.truncf %40 : vector<64x64xf32> to vector<64x64xbf16>
    %42 = vector.extract_strided_slice %23 {offsets = [0, 1], sizes = [64, 1], strides = [1, 1]} : vector<64x2xf32> to vector<64x1xf32>
    %43 = vector.extract_strided_slice %24 {offsets = [1, 0], sizes = [1, 64], strides = [1, 1]} : vector<2x64xf32> to vector<1x64xf32>
    %44 = vector.broadcast %42 : vector<64x1xf32> to vector<64x64xf32>
    %45 = vector.broadcast %43 : vector<1x64xf32> to vector<64x64xf32>
    %46 = arith.addf %44, %45 : vector<64x64xf32>
    %cst_20 = arith.constant 2.000000e-01 : f32
    %47 = vector.broadcast %cst_20 : f32 to vector<64x64xf32>
    %48 = arith.mulf %47, %46 : vector<64x64xf32>
    %49 = arith.maximumf %46, %48 : vector<64x64xf32>
    %50 = arith.addf %49, %7 : vector<64x64xf32>
    %cst_21 = arith.constant dense<0xFF800000> : vector<64xf32>
    %51 = vector.multi_reduction <maximumf>, %50, %cst_21 [1] : vector<64x64xf32> to vector<64xf32>
    %52 = vector.shape_cast %51 : vector<64xf32> to vector<64x1xf32>
    %cst_22 = arith.constant -1.000000e+20 : f32
    %53 = vector.broadcast %cst_22 : f32 to vector<64x1xf32>
    %54 = arith.maximumf %52, %53 : vector<64x1xf32>
    %55 = vector.broadcast %54 : vector<64x1xf32> to vector<64x64xf32>
    %56 = arith.subf %50, %55 : vector<64x64xf32>
    %57 = math.exp %56 : vector<64x64xf32>
    %58 = arith.truncf %57 : vector<64x64xf32> to vector<64x64xbf16>
    %59 = tpu.concatenate %41, %58 in 0 : vector<64x64xbf16>, vector<64x64xbf16> -> vector<128x64xbf16>
    %cst_23 = arith.constant dense<0.000000e+00> : vector<128x33xf32>
    %60 = tpu.matmul %59, %22, %cst_23 {dimension_numbers = #tpu.dot_dimension_numbers<[1], [0], [0], [1], [0, 0, 1, 1], [], []>} : vector<128x64xbf16>, vector<64x33xbf16>, vector<128x33xf32> -> vector<128x33xf32>
    %cst_24 = arith.constant 0.000000e+00 : f32
    %61 = vector.broadcast %cst_24 : f32 to vector<64x32xf32>
    %62 = vector.extract_strided_slice %60 {offsets = [0, 0], sizes = [64, 33], strides = [1, 1]} : vector<128x33xf32> to vector<64x33xf32>
    %63 = vector.extract_strided_slice %62 {offsets = [0, 0], sizes = [64, 32], strides = [1, 1]} : vector<64x33xf32> to vector<64x32xf32>
    %64 = vector.extract_strided_slice %62 {offsets = [0, 32], sizes = [64, 1], strides = [1, 1]} : vector<64x33xf32> to vector<64x1xf32>
    %cst_25 = arith.constant 9.99999996E-13 : f32
    %65 = vector.broadcast %cst_25 : f32 to vector<64x1xf32>
    %66 = arith.addf %64, %65 : vector<64x1xf32>
    %67 = tpu.reciprocal %66 {approx = true} : vector<64x1xf32> -> vector<64x1xf32>
    %68 = vector.broadcast %67 : vector<64x1xf32> to vector<64x32xf32>
    %69 = arith.mulf %63, %68 : vector<64x32xf32>
    %70 = vector.extract_strided_slice %19 {offsets = [0, 0], sizes = [1, 32], strides = [1, 1]} : vector<2x32xf32> to vector<1x32xf32>
    %71 = vector.broadcast %70 : vector<1x32xf32> to vector<64x32xf32>
    %72 = arith.mulf %69, %71 : vector<64x32xf32>
    %73 = arith.addf %61, %72 : vector<64x32xf32>
    %74 = vector.extract_strided_slice %60 {offsets = [64, 0], sizes = [64, 33], strides = [1, 1]} : vector<128x33xf32> to vector<64x33xf32>
    %75 = vector.extract_strided_slice %74 {offsets = [0, 0], sizes = [64, 32], strides = [1, 1]} : vector<64x33xf32> to vector<64x32xf32>
    %76 = vector.extract_strided_slice %74 {offsets = [0, 32], sizes = [64, 1], strides = [1, 1]} : vector<64x33xf32> to vector<64x1xf32>
    %cst_26 = arith.constant 9.99999996E-13 : f32
    %77 = vector.broadcast %cst_26 : f32 to vector<64x1xf32>
    %78 = arith.addf %76, %77 : vector<64x1xf32>
    %79 = tpu.reciprocal %78 {approx = true} : vector<64x1xf32> -> vector<64x1xf32>
    %80 = vector.broadcast %79 : vector<64x1xf32> to vector<64x32xf32>
    %81 = arith.mulf %75, %80 : vector<64x32xf32>
    %82 = vector.extract_strided_slice %19 {offsets = [1, 0], sizes = [1, 32], strides = [1, 1]} : vector<2x32xf32> to vector<1x32xf32>
    %83 = vector.broadcast %82 : vector<1x32xf32> to vector<64x32xf32>
    %84 = arith.mulf %81, %83 : vector<64x32xf32>
    %85 = arith.addf %73, %84 : vector<64x32xf32>
    %cst_27 = arith.constant 0.000000e+00 : f32
    %86 = vector.broadcast %cst_27 : f32 to vector<64x32xf32>
    %87 = arith.cmpf ogt, %85, %86 : vector<64x32xf32>
    %88 = math.exp %85 : vector<64x32xf32>
    %cst_28 = arith.constant 1.000000e+00 : f32
    %89 = vector.broadcast %cst_28 : f32 to vector<64x32xf32>
    %90 = arith.subf %88, %89 : vector<64x32xf32>
    %91 = arith.select %87, %85, %90 : vector<64x32xi1>, vector<64x32xf32>
    %c0_29 = arith.constant 0 : index
    %c0_30 = arith.constant 0 : index
    %92 = vector.load %arg7[%c0_29, %c0_30] : memref<2x32xbf16, #tpu.memory_space<vmem>>, vector<2x32xbf16>
    %c0_31 = arith.constant 0 : index
    %c0_32 = arith.constant 0 : index
    %93 = vector.load %arg8[%c0_31, %c0_32] : memref<2x32xbf16, #tpu.memory_space<vmem>>, vector<2x32xbf16>
    %c0_33 = arith.constant 0 : index
    %c0_34 = arith.constant 0 : index
    %94 = vector.load %arg9[%c0_33, %c0_34] : memref<2x32xf32, #tpu.memory_space<vmem>>, vector<2x32xf32>
    %95 = arith.truncf %91 : vector<64x32xf32> to vector<64x32xbf16>
    %96 = tpu.concatenate %91, %16 in 1 : vector<64x32xf32>, vector<64x1xf32> -> vector<64x33xf32>
    %97 = arith.truncf %96 : vector<64x33xf32> to vector<64x33xbf16>
    %cst_35 = arith.constant dense<0.000000e+00> : vector<64x2xf32>
    %98 = tpu.matmul %95, %92, %cst_35 {dimension_numbers = #tpu.dot_dimension_numbers<[1], [1], [0], [0], [0, 0, 1, 0], [], []>} : vector<64x32xbf16>, vector<2x32xbf16>, vector<64x2xf32> -> vector<64x2xf32>
    %cst_36 = arith.constant dense<0.000000e+00> : vector<2x64xf32>
    %99 = tpu.matmul %93, %95, %cst_36 {dimension_numbers = #tpu.dot_dimension_numbers<[1], [1], [0], [0], [0, 0, 1, 0], [], []>} : vector<2x32xbf16>, vector<64x32xbf16>, vector<2x64xf32> -> vector<2x64xf32>
    %100 = vector.extract_strided_slice %98 {offsets = [0, 0], sizes = [64, 1], strides = [1, 1]} : vector<64x2xf32> to vector<64x1xf32>
    %101 = vector.extract_strided_slice %99 {offsets = [0, 0], sizes = [1, 64], strides = [1, 1]} : vector<2x64xf32> to vector<1x64xf32>
    %102 = vector.broadcast %100 : vector<64x1xf32> to vector<64x64xf32>
    %103 = vector.broadcast %101 : vector<1x64xf32> to vector<64x64xf32>
    %104 = arith.addf %102, %103 : vector<64x64xf32>
    %cst_37 = arith.constant 2.000000e-01 : f32
    %105 = vector.broadcast %cst_37 : f32 to vector<64x64xf32>
    %106 = arith.mulf %105, %104 : vector<64x64xf32>
    %107 = arith.maximumf %104, %106 : vector<64x64xf32>
    %108 = arith.addf %107, %7 : vector<64x64xf32>
    %cst_38 = arith.constant dense<0xFF800000> : vector<64xf32>
    %109 = vector.multi_reduction <maximumf>, %108, %cst_38 [1] : vector<64x64xf32> to vector<64xf32>
    %110 = vector.shape_cast %109 : vector<64xf32> to vector<64x1xf32>
    %cst_39 = arith.constant -1.000000e+20 : f32
    %111 = vector.broadcast %cst_39 : f32 to vector<64x1xf32>
    %112 = arith.maximumf %110, %111 : vector<64x1xf32>
    %113 = vector.broadcast %112 : vector<64x1xf32> to vector<64x64xf32>
    %114 = arith.subf %108, %113 : vector<64x64xf32>
    %115 = math.exp %114 : vector<64x64xf32>
    %116 = arith.truncf %115 : vector<64x64xf32> to vector<64x64xbf16>
    %117 = vector.extract_strided_slice %98 {offsets = [0, 1], sizes = [64, 1], strides = [1, 1]} : vector<64x2xf32> to vector<64x1xf32>
    %118 = vector.extract_strided_slice %99 {offsets = [1, 0], sizes = [1, 64], strides = [1, 1]} : vector<2x64xf32> to vector<1x64xf32>
    %119 = vector.broadcast %117 : vector<64x1xf32> to vector<64x64xf32>
    %120 = vector.broadcast %118 : vector<1x64xf32> to vector<64x64xf32>
    %121 = arith.addf %119, %120 : vector<64x64xf32>
    %cst_40 = arith.constant 2.000000e-01 : f32
    %122 = vector.broadcast %cst_40 : f32 to vector<64x64xf32>
    %123 = arith.mulf %122, %121 : vector<64x64xf32>
    %124 = arith.maximumf %121, %123 : vector<64x64xf32>
    %125 = arith.addf %124, %7 : vector<64x64xf32>
    %cst_41 = arith.constant dense<0xFF800000> : vector<64xf32>
    %126 = vector.multi_reduction <maximumf>, %125, %cst_41 [1] : vector<64x64xf32> to vector<64xf32>
    %127 = vector.shape_cast %126 : vector<64xf32> to vector<64x1xf32>
    %cst_42 = arith.constant -1.000000e+20 : f32
    %128 = vector.broadcast %cst_42 : f32 to vector<64x1xf32>
    %129 = arith.maximumf %127, %128 : vector<64x1xf32>
    %130 = vector.broadcast %129 : vector<64x1xf32> to vector<64x64xf32>
    %131 = arith.subf %125, %130 : vector<64x64xf32>
    %132 = math.exp %131 : vector<64x64xf32>
    %133 = arith.truncf %132 : vector<64x64xf32> to vector<64x64xbf16>
    %134 = tpu.concatenate %116, %133 in 0 : vector<64x64xbf16>, vector<64x64xbf16> -> vector<128x64xbf16>
    %cst_43 = arith.constant dense<0.000000e+00> : vector<128x33xf32>
    %135 = tpu.matmul %134, %97, %cst_43 {dimension_numbers = #tpu.dot_dimension_numbers<[1], [0], [0], [1], [0, 0, 1, 1], [], []>} : vector<128x64xbf16>, vector<64x33xbf16>, vector<128x33xf32> -> vector<128x33xf32>
    %cst_44 = arith.constant 0.000000e+00 : f32
    %136 = vector.broadcast %cst_44 : f32 to vector<64x32xf32>
    %137 = vector.extract_strided_slice %135 {offsets = [0, 0], sizes = [64, 33], strides = [1, 1]} : vector<128x33xf32> to vector<64x33xf32>
    %138 = vector.extract_strided_slice %137 {offsets = [0, 0], sizes = [64, 32], strides = [1, 1]} : vector<64x33xf32> to vector<64x32xf32>
    %139 = vector.extract_strided_slice %137 {offsets = [0, 32], sizes = [64, 1], strides = [1, 1]} : vector<64x33xf32> to vector<64x1xf32>
    %cst_45 = arith.constant 9.99999996E-13 : f32
    %140 = vector.broadcast %cst_45 : f32 to vector<64x1xf32>
    %141 = arith.addf %139, %140 : vector<64x1xf32>
    %142 = tpu.reciprocal %141 {approx = true} : vector<64x1xf32> -> vector<64x1xf32>
    %143 = vector.broadcast %142 : vector<64x1xf32> to vector<64x32xf32>
    %144 = arith.mulf %138, %143 : vector<64x32xf32>
    %145 = vector.extract_strided_slice %94 {offsets = [0, 0], sizes = [1, 32], strides = [1, 1]} : vector<2x32xf32> to vector<1x32xf32>
    %146 = vector.broadcast %145 : vector<1x32xf32> to vector<64x32xf32>
    %147 = arith.mulf %144, %146 : vector<64x32xf32>
    %148 = arith.addf %136, %147 : vector<64x32xf32>
    %149 = vector.extract_strided_slice %135 {offsets = [64, 0], sizes = [64, 33], strides = [1, 1]} : vector<128x33xf32> to vector<64x33xf32>
    %150 = vector.extract_strided_slice %149 {offsets = [0, 0], sizes = [64, 32], strides = [1, 1]} : vector<64x33xf32> to vector<64x32xf32>
    %151 = vector.extract_strided_slice %149 {offsets = [0, 32], sizes = [64, 1], strides = [1, 1]} : vector<64x33xf32> to vector<64x1xf32>
    %cst_46 = arith.constant 9.99999996E-13 : f32
    %152 = vector.broadcast %cst_46 : f32 to vector<64x1xf32>
    %153 = arith.addf %151, %152 : vector<64x1xf32>
    %154 = tpu.reciprocal %153 {approx = true} : vector<64x1xf32> -> vector<64x1xf32>
    %155 = vector.broadcast %154 : vector<64x1xf32> to vector<64x32xf32>
    %156 = arith.mulf %150, %155 : vector<64x32xf32>
    %157 = vector.extract_strided_slice %94 {offsets = [1, 0], sizes = [1, 32], strides = [1, 1]} : vector<2x32xf32> to vector<1x32xf32>
    %158 = vector.broadcast %157 : vector<1x32xf32> to vector<64x32xf32>
    %159 = arith.mulf %156, %158 : vector<64x32xf32>
    %160 = arith.addf %148, %159 : vector<64x32xf32>
    %c0_47 = arith.constant 0 : index
    %c0_48 = arith.constant 0 : index
    %161 = vector.load %arg10[%c0_47, %c0_48] : memref<64x32xf32, #tpu.memory_space<vmem>>, vector<64x32xf32>
    tpu.vector_store %arg10[%c0_47, %c0_48], %160 {strides = array<i32>} : memref<64x32xf32, #tpu.memory_space<vmem>>, vector<64x32xf32>,
    return
  }
  func.func @transform_0(%arg0: i32) -> (i32, i32) {
    %c0_i32 = arith.constant 0 : i32
    %c0_i32_0 = arith.constant 0 : i32
    %c0_i32_1 = arith.constant 0 : i32
    return %c0_i32, %c0_i32_0 : i32, i32
  }
  func.func @transform_1(%arg0: i32) -> (i32, i32) {
    %c0_i32 = arith.constant 0 : i32
    %c0_i32_0 = arith.constant 0 : i32
    %c0_i32_1 = arith.constant 0 : i32
    return %c0_i32, %c0_i32_0 : i32, i32
  }
  func.func @transform_2(%arg0: i32) -> (i32, i32) {
    %c0_i32 = arith.constant 0 : i32
    %c0_i32_0 = arith.constant 0 : i32
    %c0_i32_1 = arith.constant 0 : i32
    return %c0_i32, %c0_i32_0 : i32, i32
  }
  func.func @transform_3(%arg0: i32) -> (i32, i32) {
    %c0_i32 = arith.constant 0 : i32
    %c0_i32_0 = arith.constant 0 : i32
    %c0_i32_1 = arith.constant 0 : i32
    return %c0_i32, %c0_i32_0 : i32, i32
  }
  func.func @transform_4(%arg0: i32) -> (i32, i32) {
    %c0_i32 = arith.constant 0 : i32
    %c0_i32_0 = arith.constant 0 : i32
    %c0_i32_1 = arith.constant 0 : i32
    return %c0_i32, %c0_i32_0 : i32, i32
  }
  func.func @transform_5(%arg0: i32) -> (i32, i32) {
    %c0_i32 = arith.constant 0 : i32
    %c0_i32_0 = arith.constant 0 : i32
    %c0_i32_1 = arith.constant 0 : i32
    return %c0_i32, %c0_i32_0 : i32, i32
  }
  func.func @transform_6(%arg0: i32) -> (i32, i32) {
    %c0_i32 = arith.constant 0 : i32
    %c0_i32_0 = arith.constant 0 : i32
    %c0_i32_1 = arith.constant 0 : i32
    return %c0_i32, %c0_i32_0 : i32, i32
  }
  func.func @transform_7(%arg0: i32) -> (i32, i32) {
    %c0_i32 = arith.constant 0 : i32
    %c0_i32_0 = arith.constant 0 : i32
    %c0_i32_1 = arith.constant 0 : i32
    return %c0_i32, %c0_i32_0 : i32, i32
  }
  func.func @transform_8(%arg0: i32) -> (i32, i32) {
    %c0_i32 = arith.constant 0 : i32
    %c0_i32_0 = arith.constant 0 : i32
    %c0_i32_1 = arith.constant 0 : i32
    return %c0_i32, %c0_i32_0 : i32, i32
  }
  func.func @transform_9(%arg0: i32) -> (i32, i32) {
    %c0_i32 = arith.constant 0 : i32
    %c0_i32_0 = arith.constant 0 : i32
    %c0_i32_1 = arith.constant 0 : i32
    return %c0_i32, %c0_i32_0 : i32, i32
  }
}

</mosaic_0001>

<llo_original>
// kernel: rgat3_forward.1
$region0: #{rgat3_forward.1}
  #allocation0 [shape = 'u32[]', space=smem, size = 0x4, offset = 0x4, fixed_abs, tag = 'smem constant byte address 0x4 - core index']
  #allocation1 [shape = 'u32[144,128]{1,0:T(1,128)}', space=vmem, size = 0x12000, scoped, tag = 'internal scratch']
  %s0 = inlined_call_operand.vmem [shape: f32[64,32], index: 0, kind: input, shape index: {}]
  %s1 = inlined_call_operand.vmem [shape: f32[64,64], index: 1, kind: input, shape index: {}]
  %s2 = inlined_call_operand.vmem [shape: f32[64,64], index: 2, kind: input, shape index: {}]
  %s3 = inlined_call_operand.vmem [shape: bf16[2,32], index: 3, kind: input, shape index: {}]
  %s4 = inlined_call_operand.vmem [shape: bf16[2,32], index: 4, kind: input, shape index: {}]
  %s5 = inlined_call_operand.vmem [shape: f32[2,32], index: 5, kind: input, shape index: {}]
  %s6 = inlined_call_operand.vmem [shape: bf16[2,32], index: 6, kind: input, shape index: {}]
  %s7 = inlined_call_operand.vmem [shape: bf16[2,32], index: 7, kind: input, shape index: {}]
  %s8 = inlined_call_operand.vmem [shape: f32[2,32], index: 8, kind: input, shape index: {}]
  %s9 = inlined_call_operand.vmem [shape: f32[64,32], index: 9, kind: output, shape index: {}]
  %s10 = sld [smem:[#allocation0]]
  $region46: #{rgat3_forward.1} parent=0
    _
  %s12 = ssub.s32 1, %s10
  %s13 = scalar_select 0, %s12, %s10
  // Predicated region
  $region2: #{rgat3_forward.1} parent=0 // pred_check
    _
  $region3: #{rgat3_forward.1} parent=0 // pred_check_branch
    %15 = sbr.rel (0) target = $region5
  $region4: #{rgat3_forward.1} parent=0 // pred_region
    _
  $region5: #{rgat3_forward.1} parent=0 // pred_fallthru
    _
  // Predicated region
  $region6: #{rgat3_forward.1} parent=0 // pred_check
    _
  $region7: #{rgat3_forward.1} parent=0 // pred_check_branch
    %17 = sbr.rel (0) target = $region9
  $region8: #{rgat3_forward.1} parent=0 // pred_region
    _
  $region9: #{rgat3_forward.1} parent=0 // pred_fallthru
    _
  // Predicated region
  $region10: #{rgat3_forward.1} parent=0 // pred_check
    _
  $region11: #{rgat3_forward.1} parent=0 // pred_check_branch
    %19 = sbr.rel (0) target = $region13
  $region12: #{rgat3_forward.1} parent=0 // pred_region
    _
  $region13: #{rgat3_forward.1} parent=0 // pred_fallthru
    _
  // Predicated region
  $region14: #{rgat3_forward.1} parent=0 // pred_check
    _
  $region15: #{rgat3_forward.1} parent=0 // pred_check_branch
    %21 = sbr.rel (0) target = $region17
  $region16: #{rgat3_forward.1} parent=0 // pred_region
    _
  $region17: #{rgat3_forward.1} parent=0 // pred_fallthru
    _
  // Predicated region
  $region18: #{rgat3_forward.1} parent=0 // pred_check
    _
  $region19: #{rgat3_forward.1} parent=0 // pred_check_branch
    %23 = sbr.rel (0) target = $region21
  $region20: #{rgat3_forward.1} parent=0 // pred_region
    _
  $region21: #{rgat3_forward.1} parent=0 // pred_fallthru
    _
  // Predicated region
  $region22: #{rgat3_forward.1} parent=0 // pred_check
    _
  $region23: #{rgat3_forward.1} parent=0 // pred_check_branch
    %25 = sbr.rel (0) target = $region25
  $region24: #{rgat3_forward.1} parent=0 // pred_region
    _
  $region25: #{rgat3_forward.1} parent=0 // pred_fallthru
    _
  // Predicated region
  $region26: #{rgat3_forward.1} parent=0 // pred_check
    _
  $region27: #{rgat3_forward.1} parent=0 // pred_check_branch
    %27 = sbr.rel (0) target = $region29
  $region28: #{rgat3_forward.1} parent=0 // pred_region
    _
  $region29: #{rgat3_forward.1} parent=0 // pred_fallthru
    _
  // Predicated region
  $region30: #{rgat3_forward.1} parent=0 // pred_check
    _
  $region31: #{rgat3_forward.1} parent=0 // pred_check_branch
    %29 = sbr.rel (0) target = $region33
  $region32: #{rgat3_forward.1} parent=0 // pred_region
    _
  $region33: #{rgat3_forward.1} parent=0 // pred_fallthru
    _
  // Predicated region
  $region34: #{rgat3_forward.1} parent=0 // pred_check
    _
  $region35: #{rgat3_forward.1} parent=0 // pred_check_branch
    %31 = sbr.rel (0) target = $region37
  $region36: #{rgat3_forward.1} parent=0 // pred_region
    _
  $region37: #{rgat3_forward.1} parent=0 // pred_fallthru
    _
  %v33 = vld [vmem:[%s0] sm:$0xff]
  %v34 = vld [vmem:[%s0 + $0x8] sm:$0xff]
  %v35 = vld [vmem:[%s0 + $0x10] sm:$0xff]
  %v36 = vld [vmem:[%s0 + $0x18] sm:$0xff]
  %v37 = vld [vmem:[%s0 + $0x20] sm:$0xff]
  %v38 = vld [vmem:[%s0 + $0x28] sm:$0xff]
  %v39 = vld [vmem:[%s0 + $0x30] sm:$0xff]
  %v40 = vld [vmem:[%s0 + $0x38] sm:$0xff]
  %v41 = vld [vmem:[%s1] sm:$0xff]
  %v42 = vld [vmem:[%s1 + $0x8] sm:$0xff]
  %v43 = vld [vmem:[%s1 + $0x10] sm:$0xff]
  %v44 = vld [vmem:[%s1 + $0x18] sm:$0xff]
  %v45 = vld [vmem:[%s1 + $0x20] sm:$0xff]
  %v46 = vld [vmem:[%s1 + $0x28] sm:$0xff]
  %v47 = vld [vmem:[%s1 + $0x30] sm:$0xff]
  %v48 = vld [vmem:[%s1 + $0x38] sm:$0xff]
  %v49 = vld [vmem:[%s2] sm:$0xff]
  %v50 = vld [vmem:[%s2 + $0x8] sm:$0xff]
  %v51 = vld [vmem:[%s2 + $0x10] sm:$0xff]
  %v52 = vld [vmem:[%s2 + $0x18] sm:$0xff]
  %v53 = vld [vmem:[%s2 + $0x20] sm:$0xff]
  %v54 = vld [vmem:[%s2 + $0x28] sm:$0xff]
  %v55 = vld [vmem:[%s2 + $0x30] sm:$0xff]
  %v56 = vld [vmem:[%s2 + $0x38] sm:$0xff]
  %vm57 = vcmp.gt.f32.partialorder %v41, 0.0
  %vm58 = vcmp.gt.f32.partialorder %v42, 0.0
  %vm59 = vcmp.gt.f32.partialorder %v43, 0.0
  %vm60 = vcmp.gt.f32.partialorder %v44, 0.0
  %vm61 = vcmp.gt.f32.partialorder %v45, 0.0
  %vm62 = vcmp.gt.f32.partialorder %v46, 0.0
  %vm63 = vcmp.gt.f32.partialorder %v47, 0.0
  %vm64 = vcmp.gt.f32.partialorder %v48, 0.0
  %v65 = vlog2.pop %v49
  %v66 = vmul.f32 %v65, 0.6931472
  %v67 = vlog2.pop %v50
  %v68 = vmul.f32 %v67, 0.6931472
  %v69 = vlog2.pop %v51
  %v70 = vmul.f32 %v69, 0.6931472
  %v71 = vlog2.pop %v52
  %v72 = vmul.f32 %v71, 0.6931472
  %v73 = vlog2.pop %v53
  %v74 = vmul.f32 %v73, 0.6931472
  %v75 = vlog2.pop %v54
  %v76 = vmul.f32 %v75, 0.6931472
  %v77 = vlog2.pop %v55
  %v78 = vmul.f32 %v77, 0.6931472
  %v79 = vlog2.pop %v56
  %v80 = vmul.f32 %v79, 0.6931472
  %v81 = vsel %vm57, %v66, -1e+30
  %v82 = vsel %vm58, %v68, -1e+30
  %v83 = vsel %vm59, %v70, -1e+30
  %v84 = vsel %vm60, %v72, -1e+30
  %v85 = vsel %vm61, %v74, -1e+30
  %v86 = vsel %vm62, %v76, -1e+30
  %v87 = vsel %vm63, %v78, -1e+30
  %v88 = vsel %vm64, %v80, -1e+30
  %v89 = vmul.f32 %v33, %v33
  %v90 = vmul.f32 %v34, %v34
  %v91 = vmul.f32 %v35, %v35
  %v92 = vmul.f32 %v36, %v36
  %v93 = vmul.f32 %v37, %v37
  %v94 = vmul.f32 %v38, %v38
  %v95 = vmul.f32 %v39, %v39
  %v96 = vmul.f32 %v40, %v40
  %vm97 = vcmask 261120
  %v98 = vsel %vm97, %v89, 0.0
  %99 = vadd.xlane.f32.xlu0 %v98
  %v100 = vpop.xlane.xlu0 %99
  %v101 = vsel %vm97, %v90, 0.0
  %102 = vadd.xlane.f32.xlu0 %v101
  %v103 = vpop.xlane.xlu0 %102
  %v104 = vsel %vm97, %v91, 0.0
  %105 = vadd.xlane.f32.xlu0 %v104
  %v106 = vpop.xlane.xlu0 %105
  %v107 = vsel %vm97, %v92, 0.0
  %108 = vadd.xlane.f32.xlu0 %v107
  %v109 = vpop.xlane.xlu0 %108
  %v110 = vsel %vm97, %v93, 0.0
  %111 = vadd.xlane.f32.xlu0 %v110
  %v112 = vpop.xlane.xlu0 %111
  %v113 = vsel %vm97, %v94, 0.0
  %114 = vadd.xlane.f32.xlu0 %v113
  %v115 = vpop.xlane.xlu0 %114
  %v116 = vsel %vm97, %v95, 0.0
  %117 = vadd.xlane.f32.xlu0 %v116
  %v118 = vpop.xlane.xlu0 %117
  %v119 = vsel %vm97, %v96, 0.0
  %120 = vadd.xlane.f32.xlu0 %v119
  %v121 = vpop.xlane.xlu0 %120
  %v122 = vrsqrt.pop %v100
  %v123 = vmul.f32 %v100, %v122
  %vm124 = vcmp.eq.f32.partialorder %v100, inf
  %v125 = vsel %vm124, %v100, %v123
  %vm126 = vcmp.eq.f32.partialorder %v100, 0.0
  %v127 = vand.u32 %v100, 2147483648
  %v128 = vsel %vm126, %v127, %v125
  %v129 = vrsqrt.pop %v103
  %v130 = vmul.f32 %v103, %v129
  %vm131 = vcmp.eq.f32.partialorder %v103, inf
  %v132 = vsel %vm131, %v103, %v130
  %vm133 = vcmp.eq.f32.partialorder %v103, 0.0
  %v134 = vand.u32 %v103, 2147483648
  %v135 = vsel %vm133, %v134, %v132
  %v136 = vrsqrt.pop %v106
  %v137 = vmul.f32 %v106, %v136
  %vm138 = vcmp.eq.f32.partialorder %v106, inf
  %v139 = vsel %vm138, %v106, %v137
  %vm140 = vcmp.eq.f32.partialorder %v106, 0.0
  %v141 = vand.u32 %v106, 2147483648
  %v142 = vsel %vm140, %v141, %v139
  %v143 = vrsqrt.pop %v109
  %v144 = vmul.f32 %v109, %v143
  %vm145 = vcmp.eq.f32.partialorder %v109, inf
  %v146 = vsel %vm145, %v109, %v144
  %vm147 = vcmp.eq.f32.partialorder %v109, 0.0
  %v148 = vand.u32 %v109, 2147483648
  %v149 = vsel %vm147, %v148, %v146
  %v150 = vrsqrt.pop %v112
  %v151 = vmul.f32 %v112, %v150
  %vm152 = vcmp.eq.f32.partialorder %v112, inf
  %v153 = vsel %vm152, %v112, %v151
  %vm154 = vcmp.eq.f32.partialorder %v112, 0.0
  %v155 = vand.u32 %v112, 2147483648
  %v156 = vsel %vm154, %v155, %v153
  %v157 = vrsqrt.pop %v115
  %v158 = vmul.f32 %v115, %v157
  %vm159 = vcmp.eq.f32.partialorder %v115, inf
  %v160 = vsel %vm159, %v115, %v158
  %vm161 = vcmp.eq.f32.partialorder %v115, 0.0
  %v162 = vand.u32 %v115, 2147483648
  %v163 = vsel %vm161, %v162, %v160
  %v164 = vrsqrt.pop %v118
  %v165 = vmul.f32 %v118, %v164
  %vm166 = vcmp.eq.f32.partialorder %v118, inf
  %v167 = vsel %vm166, %v118, %v165
  %vm168 = vcmp.eq.f32.partialorder %v118, 0.0
  %v169 = vand.u32 %v118, 2147483648
  %v170 = vsel %vm168, %v169, %v167
  %v171 = vrsqrt.pop %v121
  %v172 = vmul.f32 %v121, %v171
  %vm173 = vcmp.eq.f32.partialorder %v121, inf
  %v174 = vsel %vm173, %v121, %v172
  %vm175 = vcmp.eq.f32.partialorder %v121, 0.0
  %v176 = vand.u32 %v121, 2147483648
  %v177 = vsel %vm175, %v176, %v174
  %v178 = vmax.f32 %v128, 1e-12
  %v179 = vmax.f32 %v135, 1e-12
  %v180 = vmax.f32 %v142, 1e-12
  %v181 = vmax.f32 %v149, 1e-12
  %v182 = vmax.f32 %v156, 1e-12
  %v183 = vmax.f32 %v163, 1e-12
  %v184 = vmax.f32 %v170, 1e-12
  %v185 = vmax.f32 %v177, 1e-12
  %v186 = vrcp.pop %v178
  %v187 = vmul.f32 %v33, %v186
  %v188 = vrcp.pop %v179
  %v189 = vmul.f32 %v34, %v188
  %v190 = vrcp.pop %v180
  %v191 = vmul.f32 %v35, %v190
  %v192 = vrcp.pop %v181
  %v193 = vmul.f32 %v36, %v192
  %v194 = vrcp.pop %v182
  %v195 = vmul.f32 %v37, %v194
  %v196 = vrcp.pop %v183
  %v197 = vmul.f32 %v38, %v196
  %v198 = vrcp.pop %v184
  %v199 = vmul.f32 %v39, %v198
  %v200 = vrcp.pop %v185
  %v201 = vmul.f32 %v40, %v200
  %v202 = vld [vmem:[%s3] sm:$0x1]
  %v203 = vld [vmem:[%s4] sm:$0x1]
  %v204 = vld [vmem:[%s5] sm:$0x3]
  %v205 = vpack.c.bf16 %v189, %v187
  %v206 = vpack.c.bf16 %v193, %v191
  %v207 = vpack.c.bf16 %v197, %v195
  %v208 = vpack.c.bf16 %v201, %v199
  %v209 = vsel %vm97, %v187, 1.0
  %v210 = vsel %vm97, %v189, 1.0
  %v211 = vsel %vm97, %v191, 1.0
  %v212 = vsel %vm97, %v193, 1.0
  %v213 = vsel %vm97, %v195, 1.0
  %v214 = vsel %vm97, %v197, 1.0
  %v215 = vsel %vm97, %v199, 1.0
  %v216 = vsel %vm97, %v201, 1.0
  %v217 = vpack.c.bf16 %v210, %v209
  %v218 = vpack.c.bf16 %v212, %v211
  %v219 = vpack.c.bf16 %v214, %v213
  %v220 = vpack.c.bf16 %v216, %v215
  %v222 = vsel %vm97, %v205, 0
  %v225 = vsel %vm97, %v206, 0
  %v228 = vsel %vm97, %v207, 0
  %v231 = vsel %vm97, %v208, 0
  %v234 = vsel %vm97, %v202, 0
  %236 = vmatprep.subr.bf16.mxu0 0
  %237 = vmatpush1.bf16.xpose.msra.mxu0 %v234
  %238 = vmatprep.subr.bf16.mxu0 0
  %239 = vmatpush1.bf16.xpose.msra.mxu0 0
  %240 = vmatprep.subr.bf16.mxu0 0
  %241 = vmatpush1.bf16.xpose.msra.mxu0 0
  %242 = vmatprep.subr.bf16.mxu0 0
  %243 = vmatpush1.bf16.xpose.msra.mxu0 0
  %244 = vmatprep.subr.bf16.mxu0 0
  %245 = vmatpush1.bf16.xpose.msra.mxu0 0
  %246 = vmatprep.subr.bf16.mxu0 0
  %247 = vmatpush1.bf16.xpose.msra.mxu0 0
  %248 = vmatprep.subr.bf16.mxu0 0
  %249 = vmatpush1.bf16.xpose.msra.mxu0 0
  %250 = vmatprep.subr.bf16.mxu0 0
  %251 = vmatpush1.bf16.xpose.msra.mxu0 0
  %252 = vmatprep.subr.bf16.mxu0 0
  %253 = vmatpush1.bf16.xpose.msra.mxu0 0
  %254 = vmatprep.subr.bf16.mxu0 0
  %255 = vmatpush1.bf16.xpose.msra.mxu0 0
  %256 = vmatprep.subr.bf16.mxu0 0
  %257 = vmatpush1.bf16.xpose.msra.mxu0 0
  %258 = vmatprep.subr.bf16.mxu0 0
  %259 = vmatpush1.bf16.xpose.msra.mxu0 0
  %260 = vmatprep.subr.bf16.mxu0 0
  %261 = vmatpush1.bf16.xpose.msra.mxu0 0
  %262 = vmatprep.subr.bf16.mxu0 0
  %263 = vmatpush1.bf16.xpose.msra.mxu0 0
  %264 = vmatprep.subr.bf16.mxu0 0
  %265 = vmatpush1.bf16.xpose.msra.mxu0 0
  %266 = vmatprep.subr.bf16.mxu0 0
  %267 = vmatpush1.bf16.xpose.msra.mxu0 0
  %268 = vmatprep.mubr.bf16.mxu0 0
  %269 = vmatmul.mubr.bf16.gmra.mrb[0].mxu0 %v222
  %v270 = vpop.f32.mrb[0].mxu0
  %v271 = vadd.f32 0.0, %v270
  %v272 = vpop.f32.mrb[0].mxu0
  %v273 = vpop.f32.mrb[0].mxu0
  %v274 = vadd.f32 0.0, %v273
  %v275 = vpop.f32.mrb[0].mxu0
  %276 = vmatprep.mubr.bf16.mxu0 0
  %277 = vmatmul.mubr.bf16.gmra.mrb[0].mxu0 %v225
  %v278 = vpop.f32.mrb[0].mxu0
  %v279 = vadd.f32 0.0, %v278
  %v280 = vpop.f32.mrb[0].mxu0
  %v281 = vpop.f32.mrb[0].mxu0
  %v282 = vadd.f32 0.0, %v281
  %v283 = vpop.f32.mrb[0].mxu0
  %284 = vmatprep.mubr.bf16.mxu0 0
  %285 = vmatmul.mubr.bf16.gmra.mrb[0].mxu0 %v228
  %v286 = vpop.f32.mrb[0].mxu0
  %v287 = vadd.f32 0.0, %v286
  %v288 = vpop.f32.mrb[0].mxu0
  %v289 = vpop.f32.mrb[0].mxu0
  %v290 = vadd.f32 0.0, %v289
  %v291 = vpop.f32.mrb[0].mxu0
  %292 = vmatprep.mubr.bf16.mxu0 0
  %293 = vmatmul.mubr.bf16.gmra.mrb[0].mxu0 %v231
  %v294 = vpop.f32.mrb[0].mxu0
  %v295 = vadd.f32 0.0, %v294
  %v296 = vpop.f32.mrb[0].mxu0
  %v297 = vpop.f32.mrb[0].mxu0
  %v298 = vadd.f32 0.0, %v297
  %v299 = vpop.f32.mrb[0].mxu0
  %300 = vdwg.mxu0
  %v302 = vsel %vm97, %v203, 0
  %304 = vmatprep.subr.bf16.mxu0 0
  %305 = vmatpush1.bf16.xpose.msra.mxu0 %v222
  %306 = vmatprep.subr.bf16.mxu0 0
  %307 = vmatpush1.bf16.xpose.msra.mxu0 %v225
  %308 = vmatprep.subr.bf16.mxu0 0
  %309 = vmatpush1.bf16.xpose.msra.mxu0 %v228
  %310 = vmatprep.subr.bf16.mxu0 0
  %311 = vmatpush1.bf16.xpose.msra.mxu0 %v231
  %312 = vmatprep.subr.bf16.mxu0 0
  %313 = vmatpush1.bf16.xpose.msra.mxu0 0
  %314 = vmatprep.subr.bf16.mxu0 0
  %315 = vmatpush1.bf16.xpose.msra.mxu0 0
  %316 = vmatprep.subr.bf16.mxu0 0
  %317 = vmatpush1.bf16.xpose.msra.mxu0 0
  %318 = vmatprep.subr.bf16.mxu0 0
  %319 = vmatpush1.bf16.xpose.msra.mxu0 0
  %320 = vmatprep.subr.bf16.mxu0 0
  %321 = vmatpush1.bf16.xpose.msra.mxu0 0
  %322 = vmatprep.subr.bf16.mxu0 0
  %323 = vmatpush1.bf16.xpose.msra.mxu0 0
  %324 = vmatprep.subr.bf16.mxu0 0
  %325 = vmatpush1.bf16.xpose.msra.mxu0 0
  %326 = vmatprep.subr.bf16.mxu0 0
  %327 = vmatpush1.bf16.xpose.msra.mxu0 0
  %328 = vmatprep.subr.bf16.mxu0 0
  %329 = vmatpush1.bf16.xpose.msra.mxu0 0
  %330 = vmatprep.subr.bf16.mxu0 0
  %331 = vmatpush1.bf16.xpose.msra.mxu0 0
  %332 = vmatprep.subr.bf16.mxu0 0
  %333 = vmatpush1.bf16.xpose.msra.mxu0 0
  %334 = vmatprep.subr.bf16.mxu0 0
  %335 = vmatpush1.bf16.xpose.msra.mxu0 0
  %336 = vmatprep.mubr.bf16.mxu0 0
  %337 = vmatmul.mubr.bf16.gmra.mrb[0].mxu0 %v302
  %v338 = vpop.f32.mrb[0].mxu0
  %v339 = vadd.f32 0.0, %v338
  %v340 = vpop.f32.mrb[0].mxu0
  %v341 = vpop.f32.mrb[0].mxu0
  %v342 = vpop.f32.mrb[0].mxu0
  %343 = vdwg.mxu0
  %345 = vset.pattern.permute.xlu0 0
  %346 = vperm.xlu0 %345, %v271
  %v347 = vpop.permute.xlu0 %346
  %350 = vset.pattern.permute.xlu0 0
  %351 = vperm.xlu0 %350, %v274
  %v352 = vpop.permute.xlu0 %351
  %355 = vset.pattern.permute.xlu0 0
  %356 = vperm.xlu0 %355, %v279
  %v357 = vpop.permute.xlu0 %356
  %360 = vset.pattern.permute.xlu0 0
  %361 = vperm.xlu0 %360, %v282
  %v362 = vpop.permute.xlu0 %361
  %365 = vset.pattern.permute.xlu0 0
  %366 = vperm.xlu0 %365, %v287
  %v367 = vpop.permute.xlu0 %366
  %370 = vset.pattern.permute.xlu0 0
  %371 = vperm.xlu0 %370, %v290
  %v372 = vpop.permute.xlu0 %371
  %375 = vset.pattern.permute.xlu0 0
  %376 = vperm.xlu0 %375, %v295
  %v377 = vpop.permute.xlu0 %376
  %380 = vset.pattern.permute.xlu0 0
  %381 = vperm.xlu0 %380, %v298
  %v382 = vpop.permute.xlu0 %381
  %v384 = vlaneseq
  %v385 = vshrl.u32 %v384, 7
  %v386 = vsub.s32 0, %v385
  %v387 = vrot.slane %v339, %v386
  %v388 = vadd.f32 %v347, %v387
  %v389 = vadd.f32 %v352, %v387
  %v390 = vadd.f32 %v357, %v387
  %v391 = vadd.f32 %v362, %v387
  %v392 = vadd.f32 %v367, %v387
  %v393 = vadd.f32 %v372, %v387
  %v394 = vadd.f32 %v377, %v387
  %v395 = vadd.f32 %v382, %v387
  %v396 = vmul.f32 %v388, 0.2
  %v397 = vmul.f32 %v389, 0.2
  %v398 = vmul.f32 %v390, 0.2
  %v399 = vmul.f32 %v391, 0.2
  %v400 = vmul.f32 %v392, 0.2
  %v401 = vmul.f32 %v393, 0.2
  %v402 = vmul.f32 %v394, 0.2
  %v403 = vmul.f32 %v395, 0.2
  %v404 = vmax.f32 %v388, %v396
  %v405 = vmax.f32 %v389, %v397
  %v406 = vmax.f32 %v390, %v398
  %v407 = vmax.f32 %v391, %v399
  %v408 = vmax.f32 %v392, %v400
  %v409 = vmax.f32 %v393, %v401
  %v410 = vmax.f32 %v394, %v402
  %v411 = vmax.f32 %v395, %v403
  %v412 = vadd.f32 %v404, %v81
  %v413 = vadd.f32 %v405, %v82
  %v414 = vadd.f32 %v406, %v83
  %v415 = vadd.f32 %v407, %v84
  %v416 = vadd.f32 %v408, %v85
  %v417 = vadd.f32 %v409, %v86
  %v418 = vadd.f32 %v410, %v87
  %v419 = vadd.f32 %v411, %v88
  %vm420 = vcmask 523264
  %v421 = vsel %vm420, %v412, -inf
  %422 = vmax.xlane.f32.xlu0 %v421
  %v423 = vpop.xlane.xlu0 %422
  %v424 = vsel %vm420, %v413, -inf
  %425 = vmax.xlane.f32.xlu0 %v424
  %v426 = vpop.xlane.xlu0 %425
  %v427 = vsel %vm420, %v414, -inf
  %428 = vmax.xlane.f32.xlu0 %v427
  %v429 = vpop.xlane.xlu0 %428
  %v430 = vsel %vm420, %v415, -inf
  %431 = vmax.xlane.f32.xlu0 %v430
  %v432 = vpop.xlane.xlu0 %431
  %v433 = vsel %vm420, %v416, -inf
  %434 = vmax.xlane.f32.xlu0 %v433
  %v435 = vpop.xlane.xlu0 %434
  %v436 = vsel %vm420, %v417, -inf
  %437 = vmax.xlane.f32.xlu0 %v436
  %v438 = vpop.xlane.xlu0 %437
  %v439 = vsel %vm420, %v418, -inf
  %440 = vmax.xlane.f32.xlu0 %v439
  %v441 = vpop.xlane.xlu0 %440
  %v442 = vsel %vm420, %v419, -inf
  %443 = vmax.xlane.f32.xlu0 %v442
  %v444 = vpop.xlane.xlu0 %443
  %v445 = vmax.f32 %v423, -1e+20
  %v446 = vmax.f32 %v426, -1e+20
  %v447 = vmax.f32 %v429, -1e+20
  %v448 = vmax.f32 %v432, -1e+20
  %v449 = vmax.f32 %v435, -1e+20
  %v450 = vmax.f32 %v438, -1e+20
  %v451 = vmax.f32 %v441, -1e+20
  %v452 = vmax.f32 %v444, -1e+20
  %v453 = vsub.f32 %v412, %v445
  %v454 = vsub.f32 %v413, %v446
  %v455 = vsub.f32 %v414, %v447
  %v456 = vsub.f32 %v415, %v448
  %v457 = vsub.f32 %v416, %v449
  %v458 = vsub.f32 %v417, %v450
  %v459 = vsub.f32 %v418, %v451
  %v460 = vsub.f32 %v419, %v452
  %v461 = vmul.f32 %v453, 1.442695
  %v462 = vpow.pop %v461
  %v463 = vmul.f32 %v454, 1.442695
  %v464 = vpow.pop %v463
  %v465 = vmul.f32 %v455, 1.442695
  %v466 = vpow.pop %v465
  %v467 = vmul.f32 %v456, 1.442695
  %v468 = vpow.pop %v467
  %v469 = vmul.f32 %v457, 1.442695
  %v470 = vpow.pop %v469
  %v471 = vmul.f32 %v458, 1.442695
  %v472 = vpow.pop %v471
  %v473 = vmul.f32 %v459, 1.442695
  %v474 = vpow.pop %v473
  %v475 = vmul.f32 %v460, 1.442695
  %v476 = vpow.pop %v475
  %v477 = vpack.c.bf16 %v464, %v462
  %v478 = vpack.c.bf16 %v468, %v466
  %v479 = vpack.c.bf16 %v472, %v470
  %v480 = vpack.c.bf16 %v476, %v474
  %481 = vset.pattern.permute.xlu0 1
  %482 = vperm.xlu0 %481, %v271
  %v483 = vpop.permute.xlu0 %482
  %485 = vset.pattern.permute.xlu0 1
  %486 = vperm.xlu0 %485, %v274
  %v487 = vpop.permute.xlu0 %486
  %489 = vset.pattern.permute.xlu0 1
  %490 = vperm.xlu0 %489, %v279
  %v491 = vpop.permute.xlu0 %490
  %493 = vset.pattern.permute.xlu0 1
  %494 = vperm.xlu0 %493, %v282
  %v495 = vpop.permute.xlu0 %494
  %497 = vset.pattern.permute.xlu0 1
  %498 = vperm.xlu0 %497, %v287
  %v499 = vpop.permute.xlu0 %498
  %501 = vset.pattern.permute.xlu0 1
  %502 = vperm.xlu0 %501, %v290
  %v503 = vpop.permute.xlu0 %502
  %505 = vset.pattern.permute.xlu0 1
  %506 = vperm.xlu0 %505, %v295
  %v507 = vpop.permute.xlu0 %506
  %509 = vset.pattern.permute.xlu0 1
  %510 = vperm.xlu0 %509, %v298
  %v511 = vpop.permute.xlu0 %510
  %v513 = vlaneseq
  %v514 = vshrl.u32 %v513, 7
  %v515 = vsub.s32 1, %v514
  %v516 = vrot.slane %v339, %v515
  %v517 = vadd.f32 %v483, %v516
  %v518 = vadd.f32 %v487, %v516
  %v519 = vadd.f32 %v491, %v516
  %v520 = vadd.f32 %v495, %v516
  %v521 = vadd.f32 %v499, %v516
  %v522 = vadd.f32 %v503, %v516
  %v523 = vadd.f32 %v507, %v516
  %v524 = vadd.f32 %v511, %v516
  %v525 = vmul.f32 %v517, 0.2
  %v526 = vmul.f32 %v518, 0.2
  %v527 = vmul.f32 %v519, 0.2
  %v528 = vmul.f32 %v520, 0.2
  %v529 = vmul.f32 %v521, 0.2
  %v530 = vmul.f32 %v522, 0.2
  %v531 = vmul.f32 %v523, 0.2
  %v532 = vmul.f32 %v524, 0.2
  %v533 = vmax.f32 %v517, %v525
  %v534 = vmax.f32 %v518, %v526
  %v535 = vmax.f32 %v519, %v527
  %v536 = vmax.f32 %v520, %v528
  %v537 = vmax.f32 %v521, %v529
  %v538 = vmax.f32 %v522, %v530
  %v539 = vmax.f32 %v523, %v531
  %v540 = vmax.f32 %v524, %v532
  %v541 = vadd.f32 %v533, %v81
  %v542 = vadd.f32 %v534, %v82
  %v543 = vadd.f32 %v535, %v83
  %v544 = vadd.f32 %v536, %v84
  %v545 = vadd.f32 %v537, %v85
  %v546 = vadd.f32 %v538, %v86
  %v547 = vadd.f32 %v539, %v87
  %v548 = vadd.f32 %v540, %v88
  %v549 = vsel %vm420, %v541, -inf
  %550 = vmax.xlane.f32.xlu0 %v549
  %v551 = vpop.xlane.xlu0 %550
  %v552 = vsel %vm420, %v542, -inf
  %553 = vmax.xlane.f32.xlu0 %v552
  %v554 = vpop.xlane.xlu0 %553
  %v555 = vsel %vm420, %v543, -inf
  %556 = vmax.xlane.f32.xlu0 %v555
  %v557 = vpop.xlane.xlu0 %556
  %v558 = vsel %vm420, %v544, -inf
  %559 = vmax.xlane.f32.xlu0 %v558
  %v560 = vpop.xlane.xlu0 %559
  %v561 = vsel %vm420, %v545, -inf
  %562 = vmax.xlane.f32.xlu0 %v561
  %v563 = vpop.xlane.xlu0 %562
  %v564 = vsel %vm420, %v546, -inf
  %565 = vmax.xlane.f32.xlu0 %v564
  %v566 = vpop.xlane.xlu0 %565
  %v567 = vsel %vm420, %v547, -inf
  %568 = vmax.xlane.f32.xlu0 %v567
  %v569 = vpop.xlane.xlu0 %568
  %v570 = vsel %vm420, %v548, -inf
  %571 = vmax.xlane.f32.xlu0 %v570
  %v572 = vpop.xlane.xlu0 %571
  %v573 = vmax.f32 %v551, -1e+20
  %v574 = vmax.f32 %v554, -1e+20
  %v575 = vmax.f32 %v557, -1e+20
  %v576 = vmax.f32 %v560, -1e+20
  %v577 = vmax.f32 %v563, -1e+20
  %v578 = vmax.f32 %v566, -1e+20
  %v579 = vmax.f32 %v569, -1e+20
  %v580 = vmax.f32 %v572, -1e+20
  %v581 = vsub.f32 %v541, %v573
  %v582 = vsub.f32 %v542, %v574
  %v583 = vsub.f32 %v543, %v575
  %v584 = vsub.f32 %v544, %v576
  %v585 = vsub.f32 %v545, %v577
  %v586 = vsub.f32 %v546, %v578
  %v587 = vsub.f32 %v547, %v579
  %v588 = vsub.f32 %v548, %v580
  %v589 = vmul.f32 %v581, 1.442695
  %v590 = vpow.pop %v589
  %v591 = vmul.f32 %v582, 1.442695
  %v592 = vpow.pop %v591
  %v593 = vmul.f32 %v583, 1.442695
  %v594 = vpow.pop %v593
  %v595 = vmul.f32 %v584, 1.442695
  %v596 = vpow.pop %v595
  %v597 = vmul.f32 %v585, 1.442695
  %v598 = vpow.pop %v597
  %v599 = vmul.f32 %v586, 1.442695
  %v600 = vpow.pop %v599
  %v601 = vmul.f32 %v587, 1.442695
  %v602 = vpow.pop %v601
  %v603 = vmul.f32 %v588, 1.442695
  %v604 = vpow.pop %v603
  %v605 = vpack.c.bf16 %v592, %v590
  %v606 = vpack.c.bf16 %v596, %v594
  %v607 = vpack.c.bf16 %v600, %v598
  %v608 = vpack.c.bf16 %v604, %v602
  %v610 = vsel %vm420, %v477, 0
  %v613 = vsel %vm420, %v478, 0
  %v616 = vsel %vm420, %v479, 0
  %v619 = vsel %vm420, %v480, 0
  %v622 = vsel %vm420, %v605, 0
  %v625 = vsel %vm420, %v606, 0
  %v628 = vsel %vm420, %v607, 0
  %v631 = vsel %vm420, %v608, 0
  %633 = vmatprep.subr.bf16.mxu0 0
  %634 = vmatpush1.bf16.msra.mxu0 %v217
  %635 = vmatprep.subr.bf16.mxu0 0
  %636 = vmatpush1.bf16.msra.mxu0 %v218
  %637 = vmatprep.subr.bf16.mxu0 0
  %638 = vmatpush1.bf16.msra.mxu0 %v219
  %639 = vmatprep.subr.bf16.mxu0 0
  %640 = vmatpush1.bf16.msra.mxu0 %v220
  %641 = vmatprep.subr.bf16.mxu0 0
  %642 = vmatpush1.bf16.msra.mxu0 0
  %643 = vmatprep.subr.bf16.mxu0 0
  %644 = vmatpush1.bf16.msra.mxu0 0
  %645 = vmatprep.subr.bf16.mxu0 0
  %646 = vmatpush1.bf16.msra.mxu0 0
  %647 = vmatprep.subr.bf16.mxu0 0
  %648 = vmatpush1.bf16.msra.mxu0 0
  %649 = vmatprep.subr.bf16.mxu0 0
  %650 = vmatpush1.bf16.msra.mxu0 0
  %651 = vmatprep.subr.bf16.mxu0 0
  %652 = vmatpush1.bf16.msra.mxu0 0
  %653 = vmatprep.subr.bf16.mxu0 0
  %654 = vmatpush1.bf16.msra.mxu0 0
  %655 = vmatprep.subr.bf16.mxu0 0
  %656 = vmatpush1.bf16.msra.mxu0 0
  %657 = vmatprep.subr.bf16.mxu0 0
  %658 = vmatpush1.bf16.msra.mxu0 0
  %659 = vmatprep.subr.bf16.mxu0 0
  %660 = vmatpush1.bf16.msra.mxu0 0
  %661 = vmatprep.subr.bf16.mxu0 0
  %662 = vmatpush1.bf16.msra.mxu0 0
  %663 = vmatprep.subr.bf16.mxu0 0
  %664 = vmatpush1.bf16.msra.mxu0 0
  %665 = vmatprep.mubr.bf16.mxu0 0
  %666 = vmatmul.mubr.bf16.gmra.mrb[0].mxu0 %v610
  %v667 = vpop.f32.mrb[0].mxu0
  %v668 = vadd.f32 0.0, %v667
  %v669 = vpop.f32.mrb[0].mxu0
  %v670 = vpop.f32.mrb[0].mxu0
  %v671 = vadd.f32 0.0, %v670
  %v672 = vpop.f32.mrb[0].mxu0
  %673 = vmatprep.mubr.bf16.mxu0 0
  %674 = vmatmul.mubr.bf16.gmra.mrb[0].mxu0 %v613
  %v675 = vpop.f32.mrb[0].mxu0
  %v676 = vadd.f32 0.0, %v675
  %v677 = vpop.f32.mrb[0].mxu0
  %v678 = vpop.f32.mrb[0].mxu0
  %v679 = vadd.f32 0.0, %v678
  %v680 = vpop.f32.mrb[0].mxu0
  %681 = vmatprep.mubr.bf16.mxu0 0
  %682 = vmatmul.mubr.bf16.gmra.mrb[0].mxu0 %v616
  %v683 = vpop.f32.mrb[0].mxu0
  %v684 = vadd.f32 0.0, %v683
  %v685 = vpop.f32.mrb[0].mxu0
  %v686 = vpop.f32.mrb[0].mxu0
  %v687 = vadd.f32 0.0, %v686
  %v688 = vpop.f32.mrb[0].mxu0
  %689 = vmatprep.mubr.bf16.mxu0 0
  %690 = vmatmul.mubr.bf16.gmra.mrb[0].mxu0 %v619
  %v691 = vpop.f32.mrb[0].mxu0
  %v692 = vadd.f32 0.0, %v691
  %v693 = vpop.f32.mrb[0].mxu0
  %v694 = vpop.f32.mrb[0].mxu0
  %v695 = vadd.f32 0.0, %v694
  %v696 = vpop.f32.mrb[0].mxu0
  %697 = vmatprep.mubr.bf16.mxu0 0
  %698 = vmatmul.mubr.bf16.gmra.mrb[0].mxu0 %v622
  %v699 = vpop.f32.mrb[0].mxu0
  %v700 = vadd.f32 0.0, %v699
  %v701 = vpop.f32.mrb[0].mxu0
  %v702 = vpop.f32.mrb[0].mxu0
  %v703 = vadd.f32 0.0, %v702
  %v704 = vpop.f32.mrb[0].mxu0
  %705 = vmatprep.mubr.bf16.mxu0 0
  %706 = vmatmul.mubr.bf16.gmra.mrb[0].mxu0 %v625
  %v707 = vpop.f32.mrb[0].mxu0
  %v708 = vadd.f32 0.0, %v707
  %v709 = vpop.f32.mrb[0].mxu0
  %v710 = vpop.f32.mrb[0].mxu0
  %v711 = vadd.f32 0.0, %v710
  %v712 = vpop.f32.mrb[0].mxu0
  %713 = vmatprep.mubr.bf16.mxu0 0
  %714 = vmatmul.mubr.bf16.gmra.mrb[0].mxu0 %v628
  %v715 = vpop.f32.mrb[0].mxu0
  %v716 = vadd.f32 0.0, %v715
  %v717 = vpop.f32.mrb[0].mxu0
  %v718 = vpop.f32.mrb[0].mxu0
  %v719 = vadd.f32 0.0, %v718
  %v720 = vpop.f32.mrb[0].mxu0
  %721 = vmatprep.mubr.bf16.mxu0 0
  %722 = vmatmul.mubr.bf16.gmra.mrb[0].mxu0 %v631
  %v723 = vpop.f32.mrb[0].mxu0
  %v724 = vadd.f32 0.0, %v723
  %v725 = vpop.f32.mrb[0].mxu0
  %v726 = vpop.f32.mrb[0].mxu0
  %v727 = vadd.f32 0.0, %v726
  %v728 = vpop.f32.mrb[0].mxu0
  %729 = vdwg.mxu0
  %v730 = vadd.f32 %v668, 1e-12
  %v731 = vadd.f32 %v671, 1e-12
  %v732 = vadd.f32 %v676, 1e-12
  %v733 = vadd.f32 %v679, 1e-12
  %v734 = vadd.f32 %v684, 1e-12
  %v735 = vadd.f32 %v687, 1e-12
  %v736 = vadd.f32 %v692, 1e-12
  %v737 = vadd.f32 %v695, 1e-12
  %v738 = vrcp.pop %v730
  %v739 = vrcp.pop %v731
  %v740 = vrcp.pop %v732
  %v741 = vrcp.pop %v733
  %v742 = vrcp.pop %v734
  %v743 = vrcp.pop %v735
  %v744 = vrcp.pop %v736
  %v745 = vrcp.pop %v737
  %747 = vset.pattern.permute.xlu0 32
  %748 = vperm.xlu0 %747, %v738
  %v749 = vpop.permute.xlu0 %748
  %752 = vset.pattern.permute.xlu0 32
  %753 = vperm.xlu0 %752, %v739
  %v754 = vpop.permute.xlu0 %753
  %757 = vset.pattern.permute.xlu0 32
  %758 = vperm.xlu0 %757, %v740
  %v759 = vpop.permute.xlu0 %758
  %762 = vset.pattern.permute.xlu0 32
  %763 = vperm.xlu0 %762, %v741
  %v764 = vpop.permute.xlu0 %763
  %767 = vset.pattern.permute.xlu0 32
  %768 = vperm.xlu0 %767, %v742
  %v769 = vpop.permute.xlu0 %768
  %772 = vset.pattern.permute.xlu0 32
  %773 = vperm.xlu0 %772, %v743
  %v774 = vpop.permute.xlu0 %773
  %777 = vset.pattern.permute.xlu0 32
  %778 = vperm.xlu0 %777, %v744
  %v779 = vpop.permute.xlu0 %778
  %782 = vset.pattern.permute.xlu0 32
  %783 = vperm.xlu0 %782, %v745
  %v784 = vpop.permute.xlu0 %783
  %v786 = vmul.f32 %v668, %v749
  %v787 = vmul.f32 %v671, %v754
  %v788 = vmul.f32 %v676, %v759
  %v789 = vmul.f32 %v679, %v764
  %v790 = vmul.f32 %v684, %v769
  %v791 = vmul.f32 %v687, %v774
  %v792 = vmul.f32 %v692, %v779
  %v793 = vmul.f32 %v695, %v784
  %v794 = vlaneseq
  %v795 = vshrl.u32 %v794, 7
  %v796 = vsub.s32 0, %v795
  %v797 = vrot.slane %v204, %v796
  %v798 = vmul.f32 %v786, %v797
  %v799 = vmul.f32 %v787, %v797
  %v800 = vmul.f32 %v788, %v797
  %v801 = vmul.f32 %v789, %v797
  %v802 = vmul.f32 %v790, %v797
  %v803 = vmul.f32 %v791, %v797
  %v804 = vmul.f32 %v792, %v797
  %v805 = vmul.f32 %v793, %v797
  %v806 = vadd.f32 %v798, 0.0
  %v807 = vadd.f32 %v799, 0.0
  %v808 = vadd.f32 %v800, 0.0
  %v809 = vadd.f32 %v801, 0.0
  %v810 = vadd.f32 %v802, 0.0
  %v811 = vadd.f32 %v803, 0.0
  %v812 = vadd.f32 %v804, 0.0
  %v813 = vadd.f32 %v805, 0.0
  %v814 = vadd.f32 %v700, 1e-12
  %v815 = vadd.f32 %v703, 1e-12
  %v816 = vadd.f32 %v708, 1e-12
  %v817 = vadd.f32 %v711, 1e-12
  %v818 = vadd.f32 %v716, 1e-12
  %v819 = vadd.f32 %v719, 1e-12
  %v820 = vadd.f32 %v724, 1e-12
  %v821 = vadd.f32 %v727, 1e-12
  %v822 = vrcp.pop %v814
  %v823 = vrcp.pop %v815
  %v824 = vrcp.pop %v816
  %v825 = vrcp.pop %v817
  %v826 = vrcp.pop %v818
  %v827 = vrcp.pop %v819
  %v828 = vrcp.pop %v820
  %v829 = vrcp.pop %v821
  %831 = vset.pattern.permute.xlu0 32
  %832 = vperm.xlu0 %831, %v822
  %v833 = vpop.permute.xlu0 %832
  %836 = vset.pattern.permute.xlu0 32
  %837 = vperm.xlu0 %836, %v823
  %v838 = vpop.permute.xlu0 %837
  %841 = vset.pattern.permute.xlu0 32
  %842 = vperm.xlu0 %841, %v824
  %v843 = vpop.permute.xlu0 %842
  %846 = vset.pattern.permute.xlu0 32
  %847 = vperm.xlu0 %846, %v825
  %v848 = vpop.permute.xlu0 %847
  %851 = vset.pattern.permute.xlu0 32
  %852 = vperm.xlu0 %851, %v826
  %v853 = vpop.permute.xlu0 %852
  %856 = vset.pattern.permute.xlu0 32
  %857 = vperm.xlu0 %856, %v827
  %v858 = vpop.permute.xlu0 %857
  %861 = vset.pattern.permute.xlu0 32
  %862 = vperm.xlu0 %861, %v828
  %v863 = vpop.permute.xlu0 %862
  %866 = vset.pattern.permute.xlu0 32
  %867 = vperm.xlu0 %866, %v829
  %v868 = vpop.permute.xlu0 %867
  %v870 = vmul.f32 %v700, %v833
  %v871 = vmul.f32 %v703, %v838
  %v872 = vmul.f32 %v708, %v843
  %v873 = vmul.f32 %v711, %v848
  %v874 = vmul.f32 %v716, %v853
  %v875 = vmul.f32 %v719, %v858
  %v876 = vmul.f32 %v724, %v863
  %v877 = vmul.f32 %v727, %v868
  %v878 = vlaneseq
  %v879 = vshrl.u32 %v878, 7
  %v880 = vsub.s32 1, %v879
  %v881 = vrot.slane %v204, %v880
  %v882 = vmul.f32 %v870, %v881
  %v883 = vmul.f32 %v871, %v881
  %v884 = vmul.f32 %v872, %v881
  %v885 = vmul.f32 %v873, %v881
  %v886 = vmul.f32 %v874, %v881
  %v887 = vmul.f32 %v875, %v881
  %v888 = vmul.f32 %v876, %v881
  %v889 = vmul.f32 %v877, %v881
  %v890 = vadd.f32 %v806, %v882
  %v891 = vadd.f32 %v807, %v883
  %v892 = vadd.f32 %v808, %v884
  %v893 = vadd.f32 %v809, %v885
  %v894 = vadd.f32 %v810, %v886
  %v895 = vadd.f32 %v811, %v887
  %v896 = vadd.f32 %v812, %v888
  %v897 = vadd.f32 %v813, %v889
  %vm898 = vcmp.gt.f32.partialorder %v890, 0.0
  %vm899 = vcmp.gt.f32.partialorder %v891, 0.0
  %vm900 = vcmp.gt.f32.partialorder %v892, 0.0
  %vm901 = vcmp.gt.f32.partialorder %v893, 0.0
  %vm902 = vcmp.gt.f32.partialorder %v894, 0.0
  %vm903 = vcmp.gt.f32.partialorder %v895, 0.0
  %vm904 = vcmp.gt.f32.partialorder %v896, 0.0
  %vm905 = vcmp.gt.f32.partialorder %v897, 0.0
  %v906 = vmul.f32 %v890, 1.442695
  %v907 = vpow.pop %v906
  %v908 = vmul.f32 %v891, 1.442695
  %v909 = vpow.pop %v908
  %v910 = vmul.f32 %v892, 1.442695
  %v911 = vpow.pop %v910
  %v912 = vmul.f32 %v893, 1.442695
  %v913 = vpow.pop %v912
  %v914 = vmul.f32 %v894, 1.442695
  %v915 = vpow.pop %v914
  %v916 = vmul.f32 %v895, 1.442695
  %v917 = vpow.pop %v916
  %v918 = vmul.f32 %v896, 1.442695
  %v919 = vpow.pop %v918
  %v920 = vmul.f32 %v897, 1.442695
  %v921 = vpow.pop %v920
  %v922 = vsub.f32 %v907, 1.0
  %v923 = vsub.f32 %v909, 1.0
  %v924 = vsub.f32 %v911, 1.0
  %v925 = vsub.f32 %v913, 1.0
  %v926 = vsub.f32 %v915, 1.0
  %v927 = vsub.f32 %v917, 1.0
  %v928 = vsub.f32 %v919, 1.0
  %v929 = vsub.f32 %v921, 1.0
  %v930 = vsel %vm898, %v890, %v922
  %v931 = vsel %vm899, %v891, %v923
  %v932 = vsel %vm900, %v892, %v924
  %v933 = vsel %vm901, %v893, %v925
  %v934 = vsel %vm902, %v894, %v926
  %v935 = vsel %vm903, %v895, %v927
  %v936 = vsel %vm904, %v896, %v928
  %v937 = vsel %vm905, %v897, %v929
  %v938 = vld [vmem:[%s6] sm:$0x1]
  %v939 = vld [vmem:[%s7] sm:$0x1]
  %v940 = vld [vmem:[%s8] sm:$0x3]
  %v941 = vpack.c.bf16 %v931, %v930
  %v942 = vpack.c.bf16 %v933, %v932
  %v943 = vpack.c.bf16 %v935, %v934
  %v944 = vpack.c.bf16 %v937, %v936
  %v945 = vsel %vm97, %v930, 1.0
  %v946 = vsel %vm97, %v931, 1.0
  %v947 = vsel %vm97, %v932, 1.0
  %v948 = vsel %vm97, %v933, 1.0
  %v949 = vsel %vm97, %v934, 1.0
  %v950 = vsel %vm97, %v935, 1.0
  %v951 = vsel %vm97, %v936, 1.0
  %v952 = vsel %vm97, %v937, 1.0
  %v953 = vpack.c.bf16 %v946, %v945
  %v954 = vpack.c.bf16 %v948, %v947
  %v955 = vpack.c.bf16 %v950, %v949
  %v956 = vpack.c.bf16 %v952, %v951
  %v958 = vsel %vm97, %v941, 0
  %v961 = vsel %vm97, %v942, 0
  %v964 = vsel %vm97, %v943, 0
  %v967 = vsel %vm97, %v944, 0
  %v970 = vsel %vm97, %v938, 0
  %972 = vmatprep.subr.bf16.mxu0 0
  %973 = vmatpush1.bf16.xpose.msra.mxu0 %v970
  %974 = vmatprep.subr.bf16.mxu0 0
  %975 = vmatpush1.bf16.xpose.msra.mxu0 0
  %976 = vmatprep.subr.bf16.mxu0 0
  %977 = vmatpush1.bf16.xpose.msra.mxu0 0
  %978 = vmatprep.subr.bf16.mxu0 0
  %979 = vmatpush1.bf16.xpose.msra.mxu0 0
  %980 = vmatprep.subr.bf16.mxu0 0
  %981 = vmatpush1.bf16.xpose.msra.mxu0 0
  %982 = vmatprep.subr.bf16.mxu0 0
  %983 = vmatpush1.bf16.xpose.msra.mxu0 0
  %984 = vmatprep.subr.bf16.mxu0 0
  %985 = vmatpush1.bf16.xpose.msra.mxu0 0
  %986 = vmatprep.subr.bf16.mxu0 0
  %987 = vmatpush1.bf16.xpose.msra.mxu0 0
  %988 = vmatprep.subr.bf16.mxu0 0
  %989 = vmatpush1.bf16.xpose.msra.mxu0 0
  %990 = vmatprep.subr.bf16.mxu0 0
  %991 = vmatpush1.bf16.xpose.msra.mxu0 0
  %992 = vmatprep.subr.bf16.mxu0 0
  %993 = vmatpush1.bf16.xpose.msra.mxu0 0
  %994 = vmatprep.subr.bf16.mxu0 0
  %995 = vmatpush1.bf16.xpose.msra.mxu0 0
  %996 = vmatprep.subr.bf16.mxu0 0
  %997 = vmatpush1.bf16.xpose.msra.mxu0 0
  %998 = vmatprep.subr.bf16.mxu0 0
  %999 = vmatpush1.bf16.xpose.msra.mxu0 0
  %1000 = vmatprep.subr.bf16.mxu0 0
  %1001 = vmatpush1.bf16.xpose.msra.mxu0 0
  %1002 = vmatprep.subr.bf16.mxu0 0
  %1003 = vmatpush1.bf16.xpose.msra.mxu0 0
  %1004 = vmatprep.mubr.bf16.mxu0 0
  %1005 = vmatmul.mubr.bf16.gmra.mrb[0].mxu0 %v958
  %v1006 = vpop.f32.mrb[0].mxu0
  %v1007 = vadd.f32 0.0, %v1006
  %v1008 = vpop.f32.mrb[0].mxu0
  %v1009 = vpop.f32.mrb[0].mxu0
  %v1010 = vadd.f32 0.0, %v1009
  %v1011 = vpop.f32.mrb[0].mxu0
  %1012 = vmatprep.mubr.bf16.mxu0 0
  %1013 = vmatmul.mubr.bf16.gmra.mrb[0].mxu0 %v961
  %v1014 = vpop.f32.mrb[0].mxu0
  %v1015 = vadd.f32 0.0, %v1014
  %v1016 = vpop.f32.mrb[0].mxu0
  %v1017 = vpop.f32.mrb[0].mxu0
  %v1018 = vadd.f32 0.0, %v1017
  %v1019 = vpop.f32.mrb[0].mxu0
  %1020 = vmatprep.mubr.bf16.mxu0 0
  %1021 = vmatmul.mubr.bf16.gmra.mrb[0].mxu0 %v964
  %v1022 = vpop.f32.mrb[0].mxu0
  %v1023 = vadd.f32 0.0, %v1022
  %v1024 = vpop.f32.mrb[0].mxu0
  %v1025 = vpop.f32.mrb[0].mxu0
  %v1026 = vadd.f32 0.0, %v1025
  %v1027 = vpop.f32.mrb[0].mxu0
  %1028 = vmatprep.mubr.bf16.mxu0 0
  %1029 = vmatmul.mubr.bf16.gmra.mrb[0].mxu0 %v967
  %v1030 = vpop.f32.mrb[0].mxu0
  %v1031 = vadd.f32 0.0, %v1030
  %v1032 = vpop.f32.mrb[0].mxu0
  %v1033 = vpop.f32.mrb[0].mxu0
  %v1034 = vadd.f32 0.0, %v1033
  %v1035 = vpop.f32.mrb[0].mxu0
  %1036 = vdwg.mxu0
  %v1038 = vsel %vm97, %v939, 0
  %1040 = vmatprep.subr.bf16.mxu0 0
  %1041 = vmatpush1.bf16.xpose.msra.mxu0 %v958
  %1042 = vmatprep.subr.bf16.mxu0 0
  %1043 = vmatpush1.bf16.xpose.msra.mxu0 %v961
  %1044 = vmatprep.subr.bf16.mxu0 0
  %1045 = vmatpush1.bf16.xpose.msra.mxu0 %v964
  %1046 = vmatprep.subr.bf16.mxu0 0
  %1047 = vmatpush1.bf16.xpose.msra.mxu0 %v967
  %1048 = vmatprep.subr.bf16.mxu0 0
  %1049 = vmatpush1.bf16.xpose.msra.mxu0 0
  %1050 = vmatprep.subr.bf16.mxu0 0
  %1051 = vmatpush1.bf16.xpose.msra.mxu0 0
  %1052 = vmatprep.subr.bf16.mxu0 0
  %1053 = vmatpush1.bf16.xpose.msra.mxu0 0
  %1054 = vmatprep.subr.bf16.mxu0 0
  %1055 = vmatpush1.bf16.xpose.msra.mxu0 0
  %1056 = vmatprep.subr.bf16.mxu0 0
  %1057 = vmatpush1.bf16.xpose.msra.mxu0 0
  %1058 = vmatprep.subr.bf16.mxu0 0
  %1059 = vmatpush1.bf16.xpose.msra.mxu0 0
  %1060 = vmatprep.subr.bf16.mxu0 0
  %1061 = vmatpush1.bf16.xpose.msra.mxu0 0
  %1062 = vmatprep.subr.bf16.mxu0 0
  %1063 = vmatpush1.bf16.xpose.msra.mxu0 0
  %1064 = vmatprep.subr.bf16.mxu0 0
  %1065 = vmatpush1.bf16.xpose.msra.mxu0 0
  %1066 = vmatprep.subr.bf16.mxu0 0
  %1067 = vmatpush1.bf16.xpose.msra.mxu0 0
  %1068 = vmatprep.subr.bf16.mxu0 0
  %1069 = vmatpush1.bf16.xpose.msra.mxu0 0
  %1070 = vmatprep.subr.bf16.mxu0 0
  %1071 = vmatpush1.bf16.xpose.msra.mxu0 0
  %1072 = vmatprep.mubr.bf16.mxu0 0
  %1073 = vmatmul.mubr.bf16.gmra.mrb[0].mxu0 %v1038
  %v1074 = vpop.f32.mrb[0].mxu0
  %v1075 = vadd.f32 0.0, %v1074
  %v1076 = vpop.f32.mrb[0].mxu0
  %v1077 = vpop.f32.mrb[0].mxu0
  %v1078 = vpop.f32.mrb[0].mxu0
  %1079 = vdwg.mxu0
  %1081 = vset.pattern.permute.xlu0 0
  %1082 = vperm.xlu0 %1081, %v1007
  %v1083 = vpop.permute.xlu0 %1082
  %1086 = vset.pattern.permute.xlu0 0
  %1087 = vperm.xlu0 %1086, %v1010
  %v1088 = vpop.permute.xlu0 %1087
  %1091 = vset.pattern.permute.xlu0 0
  %1092 = vperm.xlu0 %1091, %v1015
  %v1093 = vpop.permute.xlu0 %1092
  %1096 = vset.pattern.permute.xlu0 0
  %1097 = vperm.xlu0 %1096, %v1018
  %v1098 = vpop.permute.xlu0 %1097
  %1101 = vset.pattern.permute.xlu0 0
  %1102 = vperm.xlu0 %1101, %v1023
  %v1103 = vpop.permute.xlu0 %1102
  %1106 = vset.pattern.permute.xlu0 0
  %1107 = vperm.xlu0 %1106, %v1026
  %v1108 = vpop.permute.xlu0 %1107
  %1111 = vset.pattern.permute.xlu0 0
  %1112 = vperm.xlu0 %1111, %v1031
  %v1113 = vpop.permute.xlu0 %1112
  %1116 = vset.pattern.permute.xlu0 0
  %1117 = vperm.xlu0 %1116, %v1034
  %v1118 = vpop.permute.xlu0 %1117
  %v1120 = vlaneseq
  %v1121 = vshrl.u32 %v1120, 7
  %v1122 = vsub.s32 0, %v1121
  %v1123 = vrot.slane %v1075, %v1122
  %v1124 = vadd.f32 %v1083, %v1123
  %v1125 = vadd.f32 %v1088, %v1123
  %v1126 = vadd.f32 %v1093, %v1123
  %v1127 = vadd.f32 %v1098, %v1123
  %v1128 = vadd.f32 %v1103, %v1123
  %v1129 = vadd.f32 %v1108, %v1123
  %v1130 = vadd.f32 %v1113, %v1123
  %v1131 = vadd.f32 %v1118, %v1123
  %v1132 = vmul.f32 %v1124, 0.2
  %v1133 = vmul.f32 %v1125, 0.2
  %v1134 = vmul.f32 %v1126, 0.2
  %v1135 = vmul.f32 %v1127, 0.2
  %v1136 = vmul.f32 %v1128, 0.2
  %v1137 = vmul.f32 %v1129, 0.2
  %v1138 = vmul.f32 %v1130, 0.2
  %v1139 = vmul.f32 %v1131, 0.2
  %v1140 = vmax.f32 %v1124, %v1132
  %v1141 = vmax.f32 %v1125, %v1133
  %v1142 = vmax.f32 %v1126, %v1134
  %v1143 = vmax.f32 %v1127, %v1135
  %v1144 = vmax.f32 %v1128, %v1136
  %v1145 = vmax.f32 %v1129, %v1137
  %v1146 = vmax.f32 %v1130, %v1138
  %v1147 = vmax.f32 %v1131, %v1139
  %v1148 = vadd.f32 %v1140, %v81
  %v1149 = vadd.f32 %v1141, %v82
  %v1150 = vadd.f32 %v1142, %v83
  %v1151 = vadd.f32 %v1143, %v84
  %v1152 = vadd.f32 %v1144, %v85
  %v1153 = vadd.f32 %v1145, %v86
  %v1154 = vadd.f32 %v1146, %v87
  %v1155 = vadd.f32 %v1147, %v88
  %v1156 = vsel %vm420, %v1148, -inf
  %1157 = vmax.xlane.f32.xlu0 %v1156
  %v1158 = vpop.xlane.xlu0 %1157
  %v1159 = vsel %vm420, %v1149, -inf
  %1160 = vmax.xlane.f32.xlu0 %v1159
  %v1161 = vpop.xlane.xlu0 %1160
  %v1162 = vsel %vm420, %v1150, -inf
  %1163 = vmax.xlane.f32.xlu0 %v1162
  %v1164 = vpop.xlane.xlu0 %1163
  %v1165 = vsel %vm420, %v1151, -inf
  %1166 = vmax.xlane.f32.xlu0 %v1165
  %v1167 = vpop.xlane.xlu0 %1166
  %v1168 = vsel %vm420, %v1152, -inf
  %1169 = vmax.xlane.f32.xlu0 %v1168
  %v1170 = vpop.xlane.xlu0 %1169
  %v1171 = vsel %vm420, %v1153, -inf
  %1172 = vmax.xlane.f32.xlu0 %v1171
  %v1173 = vpop.xlane.xlu0 %1172
  %v1174 = vsel %vm420, %v1154, -inf
  %1175 = vmax.xlane.f32.xlu0 %v1174
  %v1176 = vpop.xlane.xlu0 %1175
  %v1177 = vsel %vm420, %v1155, -inf
  %1178 = vmax.xlane.f32.xlu0 %v1177
  %v1179 = vpop.xlane.xlu0 %1178
  %v1180 = vmax.f32 %v1158, -1e+20
  %v1181 = vmax.f32 %v1161, -1e+20
  %v1182 = vmax.f32 %v1164, -1e+20
  %v1183 = vmax.f32 %v1167, -1e+20
  %v1184 = vmax.f32 %v1170, -1e+20
  %v1185 = vmax.f32 %v1173, -1e+20
  %v1186 = vmax.f32 %v1176, -1e+20
  %v1187 = vmax.f32 %v1179, -1e+20
  %v1188 = vsub.f32 %v1148, %v1180
  %v1189 = vsub.f32 %v1149, %v1181
  %v1190 = vsub.f32 %v1150, %v1182
  %v1191 = vsub.f32 %v1151, %v1183
  %v1192 = vsub.f32 %v1152, %v1184
  %v1193 = vsub.f32 %v1153, %v1185
  %v1194 = vsub.f32 %v1154, %v1186
  %v1195 = vsub.f32 %v1155, %v1187
  %v1196 = vmul.f32 %v1188, 1.442695
  %v1197 = vpow.pop %v1196
  %v1198 = vmul.f32 %v1189, 1.442695
  %v1199 = vpow.pop %v1198
  %v1200 = vmul.f32 %v1190, 1.442695
  %v1201 = vpow.pop %v1200
  %v1202 = vmul.f32 %v1191, 1.442695
  %v1203 = vpow.pop %v1202
  %v1204 = vmul.f32 %v1192, 1.442695
  %v1205 = vpow.pop %v1204
  %v1206 = vmul.f32 %v1193, 1.442695
  %v1207 = vpow.pop %v1206
  %v1208 = vmul.f32 %v1194, 1.442695
  %v1209 = vpow.pop %v1208
  %v1210 = vmul.f32 %v1195, 1.442695
  %v1211 = vpow.pop %v1210
  %v1212 = vpack.c.bf16 %v1199, %v1197
  %v1213 = vpack.c.bf16 %v1203, %v1201
  %v1214 = vpack.c.bf16 %v1207, %v1205
  %v1215 = vpack.c.bf16 %v1211, %v1209
  %1216 = vset.pattern.permute.xlu0 1
  %1217 = vperm.xlu0 %1216, %v1007
  %v1218 = vpop.permute.xlu0 %1217
  %1220 = vset.pattern.permute.xlu0 1
  %1221 = vperm.xlu0 %1220, %v1010
  %v1222 = vpop.permute.xlu0 %1221
  %1224 = vset.pattern.permute.xlu0 1
  %1225 = vperm.xlu0 %1224, %v1015
  %v1226 = vpop.permute.xlu0 %1225
  %1228 = vset.pattern.permute.xlu0 1
  %1229 = vperm.xlu0 %1228, %v1018
  %v1230 = vpop.permute.xlu0 %1229
  %1232 = vset.pattern.permute.xlu0 1
  %1233 = vperm.xlu0 %1232, %v1023
  %v1234 = vpop.permute.xlu0 %1233
  %1236 = vset.pattern.permute.xlu0 1
  %1237 = vperm.xlu0 %1236, %v1026
  %v1238 = vpop.permute.xlu0 %1237
  %1240 = vset.pattern.permute.xlu0 1
  %1241 = vperm.xlu0 %1240, %v1031
  %v1242 = vpop.permute.xlu0 %1241
  %1244 = vset.pattern.permute.xlu0 1
  %1245 = vperm.xlu0 %1244, %v1034
  %v1246 = vpop.permute.xlu0 %1245
  %v1248 = vlaneseq
  %v1249 = vshrl.u32 %v1248, 7
  %v1250 = vsub.s32 1, %v1249
  %v1251 = vrot.slane %v1075, %v1250
  %v1252 = vadd.f32 %v1218, %v1251
  %v1253 = vadd.f32 %v1222, %v1251
  %v1254 = vadd.f32 %v1226, %v1251
  %v1255 = vadd.f32 %v1230, %v1251
  %v1256 = vadd.f32 %v1234, %v1251
  %v1257 = vadd.f32 %v1238, %v1251
  %v1258 = vadd.f32 %v1242, %v1251
  %v1259 = vadd.f32 %v1246, %v1251
  %v1260 = vmul.f32 %v1252, 0.2
  %v1261 = vmul.f32 %v1253, 0.2
  %v1262 = vmul.f32 %v1254, 0.2
  %v1263 = vmul.f32 %v1255, 0.2
  %v1264 = vmul.f32 %v1256, 0.2
  %v1265 = vmul.f32 %v1257, 0.2
  %v1266 = vmul.f32 %v1258, 0.2
  %v1267 = vmul.f32 %v1259, 0.2
  %v1268 = vmax.f32 %v1252, %v1260
  %v1269 = vmax.f32 %v1253, %v1261
  %v1270 = vmax.f32 %v1254, %v1262
  %v1271 = vmax.f32 %v1255, %v1263
  %v1272 = vmax.f32 %v1256, %v1264
  %v1273 = vmax.f32 %v1257, %v1265
  %v1274 = vmax.f32 %v1258, %v1266
  %v1275 = vmax.f32 %v1259, %v1267
  %v1276 = vadd.f32 %v1268, %v81
  %v1277 = vadd.f32 %v1269, %v82
  %v1278 = vadd.f32 %v1270, %v83
  %v1279 = vadd.f32 %v1271, %v84
  %v1280 = vadd.f32 %v1272, %v85
  %v1281 = vadd.f32 %v1273, %v86
  %v1282 = vadd.f32 %v1274, %v87
  %v1283 = vadd.f32 %v1275, %v88
  %v1284 = vsel %vm420, %v1276, -inf
  %1285 = vmax.xlane.f32.xlu0 %v1284
  %v1286 = vpop.xlane.xlu0 %1285
  %v1287 = vsel %vm420, %v1277, -inf
  %1288 = vmax.xlane.f32.xlu0 %v1287
  %v1289 = vpop.xlane.xlu0 %1288
  %v1290 = vsel %vm420, %v1278, -inf
  %1291 = vmax.xlane.f32.xlu0 %v1290
  %v1292 = vpop.xlane.xlu0 %1291
  %v1293 = vsel %vm420, %v1279, -inf
  %1294 = vmax.xlane.f32.xlu0 %v1293
  %v1295 = vpop.xlane.xlu0 %1294
  %v1296 = vsel %vm420, %v1280, -inf
  %1297 = vmax.xlane.f32.xlu0 %v1296
  %v1298 = vpop.xlane.xlu0 %1297
  %v1299 = vsel %vm420, %v1281, -inf
  %1300 = vmax.xlane.f32.xlu0 %v1299
  %v1301 = vpop.xlane.xlu0 %1300
  %v1302 = vsel %vm420, %v1282, -inf
  %1303 = vmax.xlane.f32.xlu0 %v1302
  %v1304 = vpop.xlane.xlu0 %1303
  %v1305 = vsel %vm420, %v1283, -inf
  %1306 = vmax.xlane.f32.xlu0 %v1305
  %v1307 = vpop.xlane.xlu0 %1306
  %v1308 = vmax.f32 %v1286, -1e+20
  %v1309 = vmax.f32 %v1289, -1e+20
  %v1310 = vmax.f32 %v1292, -1e+20
  %v1311 = vmax.f32 %v1295, -1e+20
  %v1312 = vmax.f32 %v1298, -1e+20
  %v1313 = vmax.f32 %v1301, -1e+20
  %v1314 = vmax.f32 %v1304, -1e+20
  %v1315 = vmax.f32 %v1307, -1e+20
  %v1316 = vsub.f32 %v1276, %v1308
  %v1317 = vsub.f32 %v1277, %v1309
  %v1318 = vsub.f32 %v1278, %v1310
  %v1319 = vsub.f32 %v1279, %v1311
  %v1320 = vsub.f32 %v1280, %v1312
  %v1321 = vsub.f32 %v1281, %v1313
  %v1322 = vsub.f32 %v1282, %v1314
  %v1323 = vsub.f32 %v1283, %v1315
  %v1324 = vmul.f32 %v1316, 1.442695
  %v1325 = vpow.pop %v1324
  %v1326 = vmul.f32 %v1317, 1.442695
  %v1327 = vpow.pop %v1326
  %v1328 = vmul.f32 %v1318, 1.442695
  %v1329 = vpow.pop %v1328
  %v1330 = vmul.f32 %v1319, 1.442695
  %v1331 = vpow.pop %v1330
  %v1332 = vmul.f32 %v1320, 1.442695
  %v1333 = vpow.pop %v1332
  %v1334 = vmul.f32 %v1321, 1.442695
  %v1335 = vpow.pop %v1334
  %v1336 = vmul.f32 %v1322, 1.442695
  %v1337 = vpow.pop %v1336
  %v1338 = vmul.f32 %v1323, 1.442695
  %v1339 = vpow.pop %v1338
  %v1340 = vpack.c.bf16 %v1327, %v1325
  %v1341 = vpack.c.bf16 %v1331, %v1329
  %v1342 = vpack.c.bf16 %v1335, %v1333
  %v1343 = vpack.c.bf16 %v1339, %v1337
  %v1345 = vsel %vm420, %v1212, 0
  %v1348 = vsel %vm420, %v1213, 0
  %v1351 = vsel %vm420, %v1214, 0
  %v1354 = vsel %vm420, %v1215, 0
  %v1357 = vsel %vm420, %v1340, 0
  %v1360 = vsel %vm420, %v1341, 0
  %v1363 = vsel %vm420, %v1342, 0
  %v1366 = vsel %vm420, %v1343, 0
  %1368 = vmatprep.subr.bf16.mxu0 0
  %1369 = vmatpush1.bf16.msra.mxu0 %v953
  %1370 = vmatprep.subr.bf16.mxu0 0
  %1371 = vmatpush1.bf16.msra.mxu0 %v954
  %1372 = vmatprep.subr.bf16.mxu0 0
  %1373 = vmatpush1.bf16.msra.mxu0 %v955
  %1374 = vmatprep.subr.bf16.mxu0 0
  %1375 = vmatpush1.bf16.msra.mxu0 %v956
  %1376 = vmatprep.subr.bf16.mxu0 0
  %1377 = vmatpush1.bf16.msra.mxu0 0
  %1378 = vmatprep.subr.bf16.mxu0 0
  %1379 = vmatpush1.bf16.msra.mxu0 0
  %1380 = vmatprep.subr.bf16.mxu0 0
  %1381 = vmatpush1.bf16.msra.mxu0 0
  %1382 = vmatprep.subr.bf16.mxu0 0
  %1383 = vmatpush1.bf16.msra.mxu0 0
  %1384 = vmatprep.subr.bf16.mxu0 0
  %1385 = vmatpush1.bf16.msra.mxu0 0
  %1386 = vmatprep.subr.bf16.mxu0 0
  %1387 = vmatpush1.bf16.msra.mxu0 0
  %1388 = vmatprep.subr.bf16.mxu0 0
  %1389 = vmatpush1.bf16.msra.mxu0 0
  %1390 = vmatprep.subr.bf16.mxu0 0
  %1391 = vmatpush1.bf16.msra.mxu0 0
  %1392 = vmatprep.subr.bf16.mxu0 0
  %1393 = vmatpush1.bf16.msra.mxu0 0
  %1394 = vmatprep.subr.bf16.mxu0 0
  %1395 = vmatpush1.bf16.msra.mxu0 0
  %1396 = vmatprep.subr.bf16.mxu0 0
  %1397 = vmatpush1.bf16.msra.mxu0 0
  %1398 = vmatprep.subr.bf16.mxu0 0
  %1399 = vmatpush1.bf16.msra.mxu0 0
  %1400 = vmatprep.mubr.bf16.mxu0 0
  %1401 = vmatmul.mubr.bf16.gmra.mrb[0].mxu0 %v1345
  %v1402 = vpop.f32.mrb[0].mxu0
  %v1403 = vadd.f32 0.0, %v1402
  %v1404 = vpop.f32.mrb[0].mxu0
  %v1405 = vpop.f32.mrb[0].mxu0
  %v1406 = vadd.f32 0.0, %v1405
  %v1407 = vpop.f32.mrb[0].mxu0
  %1408 = vmatprep.mubr.bf16.mxu0 0
  %1409 = vmatmul.mubr.bf16.gmra.mrb[0].mxu0 %v1348
  %v1410 = vpop.f32.mrb[0].mxu0
  %v1411 = vadd.f32 0.0, %v1410
  %v1412 = vpop.f32.mrb[0].mxu0
  %v1413 = vpop.f32.mrb[0].mxu0
  %v1414 = vadd.f32 0.0, %v1413
  %v1415 = vpop.f32.mrb[0].mxu0
  %1416 = vmatprep.mubr.bf16.mxu0 0
  %1417 = vmatmul.mubr.bf16.gmra.mrb[0].mxu0 %v1351
  %v1418 = vpop.f32.mrb[0].mxu0
  %v1419 = vadd.f32 0.0, %v1418
  %v1420 = vpop.f32.mrb[0].mxu0
  %v1421 = vpop.f32.mrb[0].mxu0
  %v1422 = vadd.f32 0.0, %v1421
  %v1423 = vpop.f32.mrb[0].mxu0
  %1424 = vmatprep.mubr.bf16.mxu0 0
  %1425 = vmatmul.mubr.bf16.gmra.mrb[0].mxu0 %v1354
  %v1426 = vpop.f32.mrb[0].mxu0
  %v1427 = vadd.f32 0.0, %v1426
  %v1428 = vpop.f32.mrb[0].mxu0
  %v1429 = vpop.f32.mrb[0].mxu0
  %v1430 = vadd.f32 0.0, %v1429
  %v1431 = vpop.f32.mrb[0].mxu0
  %1432 = vmatprep.mubr.bf16.mxu0 0
  %1433 = vmatmul.mubr.bf16.gmra.mrb[0].mxu0 %v1357
  %v1434 = vpop.f32.mrb[0].mxu0
  %v1435 = vadd.f32 0.0, %v1434
  %v1436 = vpop.f32.mrb[0].mxu0
  %v1437 = vpop.f32.mrb[0].mxu0
  %v1438 = vadd.f32 0.0, %v1437
  %v1439 = vpop.f32.mrb[0].mxu0
  %1440 = vmatprep.mubr.bf16.mxu0 0
  %1441 = vmatmul.mubr.bf16.gmra.mrb[0].mxu0 %v1360
  %v1442 = vpop.f32.mrb[0].mxu0
  %v1443 = vadd.f32 0.0, %v1442
  %v1444 = vpop.f32.mrb[0].mxu0
  %v1445 = vpop.f32.mrb[0].mxu0
  %v1446 = vadd.f32 0.0, %v1445
  %v1447 = vpop.f32.mrb[0].mxu0
  %1448 = vmatprep.mubr.bf16.mxu0 0
  %1449 = vmatmul.mubr.bf16.gmra.mrb[0].mxu0 %v1363
  %v1450 = vpop.f32.mrb[0].mxu0
  %v1451 = vadd.f32 0.0, %v1450
  %v1452 = vpop.f32.mrb[0].mxu0
  %v1453 = vpop.f32.mrb[0].mxu0
  %v1454 = vadd.f32 0.0, %v1453
  %v1455 = vpop.f32.mrb[0].mxu0
  %1456 = vmatprep.mubr.bf16.mxu0 0
  %1457 = vmatmul.mubr.bf16.gmra.mrb[0].mxu0 %v1366
  %v1458 = vpop.f32.mrb[0].mxu0
  %v1459 = vadd.f32 0.0, %v1458
  %v1460 = vpop.f32.mrb[0].mxu0
  %v1461 = vpop.f32.mrb[0].mxu0
  %v1462 = vadd.f32 0.0, %v1461
  %v1463 = vpop.f32.mrb[0].mxu0
  %1464 = vdwg.mxu0
  %v1465 = vadd.f32 %v1403, 1e-12
  %v1466 = vadd.f32 %v1406, 1e-12
  %v1467 = vadd.f32 %v1411, 1e-12
  %v1468 = vadd.f32 %v1414, 1e-12
  %v1469 = vadd.f32 %v1419, 1e-12
  %v1470 = vadd.f32 %v1422, 1e-12
  %v1471 = vadd.f32 %v1427, 1e-12
  %v1472 = vadd.f32 %v1430, 1e-12
  %v1473 = vrcp.pop %v1465
  %v1474 = vrcp.pop %v1466
  %v1475 = vrcp.pop %v1467
  %v1476 = vrcp.pop %v1468
  %v1477 = vrcp.pop %v1469
  %v1478 = vrcp.pop %v1470
  %v1479 = vrcp.pop %v1471
  %v1480 = vrcp.pop %v1472
  %1482 = vset.pattern.permute.xlu0 32
  %1483 = vperm.xlu0 %1482, %v1473
  %v1484 = vpop.permute.xlu0 %1483
  %1487 = vset.pattern.permute.xlu0 32
  %1488 = vperm.xlu0 %1487, %v1474
  %v1489 = vpop.permute.xlu0 %1488
  %1492 = vset.pattern.permute.xlu0 32
  %1493 = vperm.xlu0 %1492, %v1475
  %v1494 = vpop.permute.xlu0 %1493
  %1497 = vset.pattern.permute.xlu0 32
  %1498 = vperm.xlu0 %1497, %v1476
  %v1499 = vpop.permute.xlu0 %1498
  %1502 = vset.pattern.permute.xlu0 32
  %1503 = vperm.xlu0 %1502, %v1477
  %v1504 = vpop.permute.xlu0 %1503
  %1507 = vset.pattern.permute.xlu0 32
  %1508 = vperm.xlu0 %1507, %v1478
  %v1509 = vpop.permute.xlu0 %1508
  %1512 = vset.pattern.permute.xlu0 32
  %1513 = vperm.xlu0 %1512, %v1479
  %v1514 = vpop.permute.xlu0 %1513
  %1517 = vset.pattern.permute.xlu0 32
  %1518 = vperm.xlu0 %1517, %v1480
  %v1519 = vpop.permute.xlu0 %1518
  %v1521 = vmul.f32 %v1403, %v1484
  %v1522 = vmul.f32 %v1406, %v1489
  %v1523 = vmul.f32 %v1411, %v1494
  %v1524 = vmul.f32 %v1414, %v1499
  %v1525 = vmul.f32 %v1419, %v1504
  %v1526 = vmul.f32 %v1422, %v1509
  %v1527 = vmul.f32 %v1427, %v1514
  %v1528 = vmul.f32 %v1430, %v1519
  %v1529 = vlaneseq
  %v1530 = vshrl.u32 %v1529, 7
  %v1531 = vsub.s32 0, %v1530
  %v1532 = vrot.slane %v940, %v1531
  %v1533 = vmul.f32 %v1521, %v1532
  %v1534 = vmul.f32 %v1522, %v1532
  %v1535 = vmul.f32 %v1523, %v1532
  %v1536 = vmul.f32 %v1524, %v1532
  %v1537 = vmul.f32 %v1525, %v1532
  %v1538 = vmul.f32 %v1526, %v1532
  %v1539 = vmul.f32 %v1527, %v1532
  %v1540 = vmul.f32 %v1528, %v1532
  %v1541 = vadd.f32 %v1533, 0.0
  %v1542 = vadd.f32 %v1534, 0.0
  %v1543 = vadd.f32 %v1535, 0.0
  %v1544 = vadd.f32 %v1536, 0.0
  %v1545 = vadd.f32 %v1537, 0.0
  %v1546 = vadd.f32 %v1538, 0.0
  %v1547 = vadd.f32 %v1539, 0.0
  %v1548 = vadd.f32 %v1540, 0.0
  %v1549 = vadd.f32 %v1435, 1e-12
  %v1550 = vadd.f32 %v1438, 1e-12
  %v1551 = vadd.f32 %v1443, 1e-12
  %v1552 = vadd.f32 %v1446, 1e-12
  %v1553 = vadd.f32 %v1451, 1e-12
  %v1554 = vadd.f32 %v1454, 1e-12
  %v1555 = vadd.f32 %v1459, 1e-12
  %v1556 = vadd.f32 %v1462, 1e-12
  %v1557 = vrcp.pop %v1549
  %v1558 = vrcp.pop %v1550
  %v1559 = vrcp.pop %v1551
  %v1560 = vrcp.pop %v1552
  %v1561 = vrcp.pop %v1553
  %v1562 = vrcp.pop %v1554
  %v1563 = vrcp.pop %v1555
  %v1564 = vrcp.pop %v1556
  %1566 = vset.pattern.permute.xlu0 32
  %1567 = vperm.xlu0 %1566, %v1557
  %v1568 = vpop.permute.xlu0 %1567
  %1571 = vset.pattern.permute.xlu0 32
  %1572 = vperm.xlu0 %1571, %v1558
  %v1573 = vpop.permute.xlu0 %1572
  %1576 = vset.pattern.permute.xlu0 32
  %1577 = vperm.xlu0 %1576, %v1559
  %v1578 = vpop.permute.xlu0 %1577
  %1581 = vset.pattern.permute.xlu0 32
  %1582 = vperm.xlu0 %1581, %v1560
  %v1583 = vpop.permute.xlu0 %1582
  %1586 = vset.pattern.permute.xlu0 32
  %1587 = vperm.xlu0 %1586, %v1561
  %v1588 = vpop.permute.xlu0 %1587
  %1591 = vset.pattern.permute.xlu0 32
  %1592 = vperm.xlu0 %1591, %v1562
  %v1593 = vpop.permute.xlu0 %1592
  %1596 = vset.pattern.permute.xlu0 32
  %1597 = vperm.xlu0 %1596, %v1563
  %v1598 = vpop.permute.xlu0 %1597
  %1601 = vset.pattern.permute.xlu0 32
  %1602 = vperm.xlu0 %1601, %v1564
  %v1603 = vpop.permute.xlu0 %1602
  %v1605 = vmul.f32 %v1435, %v1568
  %v1606 = vmul.f32 %v1438, %v1573
  %v1607 = vmul.f32 %v1443, %v1578
  %v1608 = vmul.f32 %v1446, %v1583
  %v1609 = vmul.f32 %v1451, %v1588
  %v1610 = vmul.f32 %v1454, %v1593
  %v1611 = vmul.f32 %v1459, %v1598
  %v1612 = vmul.f32 %v1462, %v1603
  %v1613 = vlaneseq
  %v1614 = vshrl.u32 %v1613, 7
  %v1615 = vsub.s32 1, %v1614
  %v1616 = vrot.slane %v940, %v1615
  %v1617 = vmul.f32 %v1605, %v1616
  %v1618 = vmul.f32 %v1606, %v1616
  %v1619 = vmul.f32 %v1607, %v1616
  %v1620 = vmul.f32 %v1608, %v1616
  %v1621 = vmul.f32 %v1609, %v1616
  %v1622 = vmul.f32 %v1610, %v1616
  %v1623 = vmul.f32 %v1611, %v1616
  %v1624 = vmul.f32 %v1612, %v1616
  %v1625 = vadd.f32 %v1541, %v1617
  %v1626 = vadd.f32 %v1542, %v1618
  %v1627 = vadd.f32 %v1543, %v1619
  %v1628 = vadd.f32 %v1544, %v1620
  %v1629 = vadd.f32 %v1545, %v1621
  %v1630 = vadd.f32 %v1546, %v1622
  %v1631 = vadd.f32 %v1547, %v1623
  %v1632 = vadd.f32 %v1548, %v1624
  %1633 = vst.msk [vmem:[%s9] sm:$0xff] %vm97, %v1625
  %1634 = vst.msk [vmem:[%s9 + $0x8] sm:$0xff] %vm97, %v1626
  %1635 = vst.msk [vmem:[%s9 + $0x10] sm:$0xff] %vm97, %v1627
  %1636 = vst.msk [vmem:[%s9 + $0x18] sm:$0xff] %vm97, %v1628
  %1637 = vst.msk [vmem:[%s9 + $0x20] sm:$0xff] %vm97, %v1629
  %1638 = vst.msk [vmem:[%s9 + $0x28] sm:$0xff] %vm97, %v1630
  %1639 = vst.msk [vmem:[%s9 + $0x30] sm:$0xff] %vm97, %v1631
  %1640 = vst.msk [vmem:[%s9 + $0x38] sm:$0xff] %vm97, %v1632
  // Predicated region
  $region38: #{rgat3_forward.1} parent=0 // pred_check
    _
  $region39: #{rgat3_forward.1} parent=0 // pred_check_branch
    %1642 = sbr.rel (0) target = $region41
  $region40: #{rgat3_forward.1} parent=0 // pred_region
    _
  $region41: #{rgat3_forward.1} parent=0 // pred_fallthru
    _
  // Predicated region
  $region42: #{rgat3_forward.1} parent=0 // pred_check
    _
  $region43: #{rgat3_forward.1} parent=0 // pred_check_branch
    %1644 = sbr.rel (0) target = $region45
  $region44: #{rgat3_forward.1} parent=0 // pred_region
    _
  $region45: #{rgat3_forward.1} parent=0 // pred_fallthru
    _

</llo_original>
